<compile_context>
chip_gen: v5e
topology: v5e:2x2
jax: 0.10.0
libtpu: 0.0.40
codegen_flags: <defaults>
</compile_context>

<pallas_src>
import functools
import math

import jax
import jax.numpy as jnp
import numpy as np
from jax import lax
from jax.experimental import pallas as pl
from jax.experimental.pallas import tpu as pltpu


def _attention_block_kernel(x_ref, gamma_ref, beta_ref, grp_ref,
                            wq_ref, wk_ref, wv_ref,
                            bq_ref, bk_ref, bv_ref,
                            wp_ref, bp_ref,
                            o_ref,
                            xn_scr, k_scr, v_scr,
                            *, num_heads, eps, q_tile, matmul_dtype,
                            approx_recip):
    """Fused GroupNorm + QKV proj + attention + out proj + residual.

    Grid: (batch, query tile).  The first query tile of each batch element
    computes GroupNorm statistics, the normalized activations and the full
    K / V projections into persistent VMEM scratch; every tile then computes
    its Q slice, attention over the full key axis and the output projection.

    x_ref   : (1, T, C)   one batch element, channels-last (resident across qi)
    gamma/beta/bq/bk/bv/bp : (1, C) f32
    grp_ref : (G, C) f32  one-hot group membership (row g selects group g)
    wq/wk/wv/wp : (C, C)  input-major projection weights in matmul_dtype
                  (attention scale pre-folded into wq / wk)
    o_ref   : (1, q_tile, C)
    xn_scr/k_scr/v_scr : (T, C) matmul_dtype persistent scratch
    """
    qi = pl.program_id(1)
    T, C = x_ref.shape[1], x_ref.shape[2]
    G = grp_ref.shape[0]
    ch = C // num_heads

    # ---- per-batch-element prologue: GroupNorm + full-T K/V projections ----
    @pl.when(qi == 0)
    def _prologue():
        x = x_ref[0].astype(jnp.float32)                      # (T, C)
        grp = grp_ref[...]                                    # (G, C)
        n = float((C // G) * T)                               # elems per group
        ch_sum = jnp.sum(x, axis=0, keepdims=True)            # (1, C)
        g_mean = lax.dot_general(ch_sum, grp, (((1,), (1,)), ((), ())),
                                 preferred_element_type=jnp.float32) / n
        mean_c = jnp.dot(g_mean, grp, preferred_element_type=jnp.float32)
        d = x - mean_c                                        # two-pass variance
        ch_sqd = jnp.sum(d * d, axis=0, keepdims=True)        # (1, C)
        g_var = lax.dot_general(ch_sqd, grp, (((1,), (1,)), ((), ())),
                                preferred_element_type=jnp.float32) / n
        g_rstd = lax.rsqrt(g_var + eps)
        rstd_c = jnp.dot(g_rstd, grp, preferred_element_type=jnp.float32)
        xn = d * rstd_c * gamma_ref[...] + beta_ref[...]      # (T, C) f32
        xn_m = xn.astype(matmul_dtype)
        xn_scr[...] = xn_m
        k_scr[...] = (jnp.dot(xn_m, wk_ref[...],
                              preferred_element_type=jnp.float32)
                      + bk_ref[...]).astype(matmul_dtype)     # scale folded in
        v_scr[...] = (jnp.dot(xn_m, wv_ref[...],
                              preferred_element_type=jnp.float32)
                      + bv_ref[...]).astype(matmul_dtype)

    # ---- this query tile ----
    row0 = pl.multiple_of(qi * q_tile, q_tile)
    xn_q = xn_scr[pl.ds(row0, q_tile), :]                     # (tq, C)
    q_all = (jnp.dot(xn_q, wq_ref[...],
                     preferred_element_type=jnp.float32)
             + bq_ref[...]).astype(matmul_dtype)              # (tq, C)
    k_all = k_scr[...]                                        # (T, C)
    v_all = v_scr[...]                                        # (T, C)

    heads = []
    for h in range(num_heads):                                # small static unroll
        q = q_all[:, h * ch:(h + 1) * ch]
        k = k_all[:, h * ch:(h + 1) * ch]
        v = v_all[:, h * ch:(h + 1) * ch]
        # (tq, T) logits; contract last dims so no k transpose is materialized.
        logits = lax.dot_general(q, k, (((1,), (1,)), ((), ())),
                                 preferred_element_type=jnp.float32)
        m = jnp.max(logits, axis=-1, keepdims=True)
        p = jnp.exp(logits - m)                               # unnormalized, f32
        l = jnp.sum(p, axis=-1, keepdims=True)                # (tq, 1)
        pv = jnp.dot(p.astype(matmul_dtype), v,
                     preferred_element_type=jnp.float32)      # (tq, ch)
        # Normalize after PV: (tq,1) reciprocal instead of a (tq,T) divide.
        inv = pl.reciprocal(l, approx=True) if approx_recip else 1.0 / l
        heads.append((pv * inv).astype(matmul_dtype))
    a_all = heads[0] if num_heads == 1 else jnp.concatenate(heads, axis=-1)

    res = x_ref[0, pl.ds(row0, q_tile), :].astype(jnp.float32)
    out = res + bp_ref[...] + jnp.dot(a_all, wp_ref[...],
                                      preferred_element_type=jnp.float32)
    o_ref[0] = out.astype(o_ref.dtype)


def _pick_q_tile(T, q_tile):
    if q_tile is not None:
        assert T % q_tile == 0 and (q_tile == T or q_tile % 8 == 0)
        return q_tile
    if T <= 512:
        return T
    for cand in (512, 384, 256, 128):                         # prefer 128-multiples
        if T % cand == 0:
            return cand
    for cand in range(504, 7, -8):
        if T % cand == 0:
            return cand
    return T


def attention_block(x, gamma, beta, w_qkv, b_qkv, w_proj, b_proj, *,
                    num_heads=1, num_groups=32, eps=1e-5,
                    matmul_dtype=jnp.bfloat16, q_tile=None):
    """Forward of AttentionBlock.

    x: (B, C, *spatial); gamma/beta: (C,); w_qkv: (3C, C) (kernel dim squeezed);
    b_qkv: (3C,); w_proj: (C, C); b_proj: (C,).
    matmul_dtype is the MXU operand dtype (accumulation is always f32).
    """
    B, C = x.shape[0], x.shape[1]
    spatial = x.shape[2:]
    T = int(np.prod(spatial))
    assert C % num_groups == 0 and C % num_heads == 0
    ch = C // num_heads
    tq = _pick_q_tile(T, q_tile)
    nq = T // tq

    # TODO(synk): channels-last relayout in the wrapper costs two extra HBM
    # passes; have the producing layer emit (B, T, C) directly if this matters.
    x_t = jnp.transpose(x.reshape(B, C, T), (0, 2, 1))        # (B, T, C)

    f32 = jnp.float32
    scale = 1.0 / math.sqrt(math.sqrt(ch))
    # Legacy qkv channel order within 3C is [head][q(ch), k(ch), v(ch)].
    # Repack into full-width, input-major (C_in, C_out) matrices with head-major
    # output channels; fold the attention scale into wq/bq and wk/bk.
    w3 = w_qkv.astype(f32).reshape(num_heads, 3, ch, C)
    b3 = b_qkv.astype(f32).reshape(num_heads, 3, ch)
    wq = (w3[:, 0].reshape(C, C) * scale).T.astype(matmul_dtype)
    wk = (w3[:, 1].reshape(C, C) * scale).T.astype(matmul_dtype)
    wv = w3[:, 2].reshape(C, C).T.astype(matmul_dtype)
    bq = b3[:, 0].reshape(1, C) * scale
    bk = b3[:, 1].reshape(1, C) * scale
    bv = b3[:, 2].reshape(1, C)
    wp = w_proj.astype(f32).T.astype(matmul_dtype)            # (C_in, C_out)
    bp = b_proj.astype(f32).reshape(1, C)
    gamma2 = gamma.astype(f32).reshape(1, C)
    beta2 = beta.astype(f32).reshape(1, C)
    # Host-built one-hot group membership (G, C): row g selects group g.
    grp = jnp.asarray(np.repeat(np.eye(num_groups, dtype=np.float32),
                                C // num_groups, axis=1))

    kernel = functools.partial(
        _attention_block_kernel, num_heads=num_heads, eps=eps, q_tile=tq,
        matmul_dtype=matmul_dtype,
        approx_recip=(jnp.dtype(matmul_dtype) != jnp.dtype(jnp.float32)))

    def whole(shape):   # full-array block, constant index_map (stays resident)
        return pl.BlockSpec(shape, lambda b, q: (0,) * len(shape))

    msize = jnp.dtype(matmul_dtype).itemsize
    xsize = jnp.dtype(x.dtype).itemsize
    vmem_est = (2 * T * C * xsize + 2 * tq * C * xsize        # x / out buffers
                + 2 * 4 * C * C * msize                       # wq, wk, wv, wp
                + 3 * T * C * msize                           # xn / k / v scratch
                + 3 * tq * T * 4                              # logits / p slabs
                + (4 << 20))                                  # headroom
    vmem_limit = int(min(max(vmem_est, 32 << 20), 48 << 20))  # fits v7x's 64 MiB

    out = pl.pallas_call(
        kernel,
        out_shape=jax.ShapeDtypeStruct((B, T, C), x.dtype),
        grid_spec=pltpu.PrefetchScalarGridSpec(
            num_scalar_prefetch=0,
            grid=(B, nq),
            in_specs=[
                pl.BlockSpec((1, T, C), lambda b, q: (b, 0, 0)),   # x (resident per b)
                whole((1, C)), whole((1, C)),                      # gamma, beta
                whole((num_groups, C)),                            # group one-hot
                whole((C, C)), whole((C, C)), whole((C, C)),       # wq, wk, wv
                whole((1, C)), whole((1, C)), whole((1, C)),       # bq, bk, bv
                whole((C, C)), whole((1, C)),                      # wp, bp
            ],
            out_specs=pl.BlockSpec((1, tq, C), lambda b, q: (b, q, 0)),
            scratch_shapes=[pltpu.VMEM((T, C), matmul_dtype),      # xn
                            pltpu.VMEM((T, C), matmul_dtype),      # k
                            pltpu.VMEM((T, C), matmul_dtype)],     # v
        ),
        compiler_params=pltpu.CompilerParams(
            dimension_semantics=("parallel", "arbitrary"),
            vmem_limit_bytes=vmem_limit),
    )(x_t, gamma2, beta2, grp, wq, wk, wv, bq, bk, bv, wp, bp)

    return jnp.transpose(out, (0, 2, 1)).reshape(B, C, *spatial)


def _attention_block_ref(x, gamma, beta, w_qkv, b_qkv, w_proj, b_proj, *,
                         num_heads=1, num_groups=32, eps=1e-5,
                         matmul_dtype=jnp.float32):
    """Pure-JAX reference for the PyTorch AttentionBlock forward.

    matmul_dtype emulates the kernel's MXU operand quantization (accumulation
    is f32 either way) so the bf16 fast path can be checked apples-to-apples.
    """
    f32 = jnp.float32
    B, C = x.shape[0], x.shape[1]
    spatial = x.shape[2:]
    T = int(np.prod(spatial))
    hp = lax.Precision.HIGHEST

    def mm(eq, a, b):
        return jnp.einsum(eq, a.astype(matmul_dtype), b.astype(matmul_dtype),
                          precision=hp, preferred_element_type=f32)

    xr = x.reshape(B, C, T).astype(f32)
    # GroupNorm32
    xg = xr.reshape(B, num_groups, (C // num_groups) * T)
    mean = jnp.mean(xg, axis=-1, keepdims=True)
    var = jnp.mean(jnp.square(xg - mean), axis=-1, keepdims=True)
    xn = ((xg - mean) / jnp.sqrt(var + eps)).reshape(B, C, T)
    xn = xn * gamma.reshape(1, C, 1) + beta.reshape(1, C, 1)
    # qkv = Conv1d(C, 3C, 1)
    qkv = mm('oc,bct->bot', w_qkv, xn) + b_qkv.reshape(1, -1, 1)
    # QKVAttentionLegacy
    ch = C // num_heads
    qkv = qkv.reshape(B * num_heads, 3 * ch, T)
    q, k, v = qkv[:, :ch], qkv[:, ch:2 * ch], qkv[:, 2 * ch:]
    scale = 1.0 / math.sqrt(math.sqrt(ch))
    w = mm('bct,bcs->bts', q * scale, k * scale)
    w = jax.nn.softmax(w, axis=-1)
    a = mm('bts,bcs->bct', w, v).reshape(B, C, T)
    # proj_out = Conv1d(C, C, 1)
    h = mm('oc,bct->bot', w_proj, a) + b_proj.reshape(1, -1, 1)
    return (xr + h).reshape(B, C, *spatial).astype(x.dtype)


if __name__ == "__main__":
    # AttentionBlock(channels=64, num_heads=2) on a (2, 64, 8, 8) input
    # (channels must be a multiple of 32 because of GroupNorm(32, channels)).
    B, C, H, W = 2, 64, 8, 8
    num_heads = 2

    key = jax.random.PRNGKey(0)
    kx, kg, kb, kw1, kb1, kw2, kb2 = jax.random.split(key, 7)
    x = jax.random.normal(kx, (B, C, H, W), dtype=jnp.float32)
    gamma = 1.0 + 0.1 * jax.random.normal(kg, (C,), dtype=jnp.float32)
    beta = 0.1 * jax.random.normal(kb, (C,), dtype=jnp.float32)
    # Conv1d(kernel_size=1) weights with the trailing kernel dim squeezed.
    # NOTE: the PyTorch module zero-initializes proj_out; random values are used
    # here so the numerical check is non-trivial (forward semantics identical).
    w_qkv = jax.random.normal(kw1, (3 * C, C), dtype=jnp.float32) / math.sqrt(C)
    b_qkv = 0.1 * jax.random.normal(kb1, (3 * C,), dtype=jnp.float32)
    w_proj = jax.random.normal(kw2, (C, C), dtype=jnp.float32) / math.sqrt(C)
    b_proj = 0.1 * jax.random.normal(kb2, (C,), dtype=jnp.float32)

    args = (x, gamma, beta, w_qkv, b_qkv, w_proj, b_proj)

    # 1) f32 MXU operands, forced multi-tile query path -> tight tolerance.
    y32 = jax.block_until_ready(
        attention_block(*args, num_heads=num_heads,
                        matmul_dtype=jnp.float32, q_tile=32))
    ref32 = _attention_block_ref(*args, num_heads=num_heads,
                                 matmul_dtype=jnp.float32)
    assert y32.shape == (B, C, H, W), y32.shape
    err32 = float(jnp.max(jnp.abs(y32 - ref32)))
    assert jnp.allclose(y32, ref32, atol=1e-3, rtol=1e-3), f"f32 max_err={err32}"

    # 2) bf16 MXU operands (default fast path) vs. a bf16-emulating reference;
    #    tolerance bounds operand-quantization + approx-reciprocal error.
    ybf = jax.block_until_ready(attention_block(*args, num_heads=num_heads))
    refbf = _attention_block_ref(*args, num_heads=num_heads,
                                 matmul_dtype=jnp.bfloat16)
    errbf = float(jnp.max(jnp.abs(ybf - refbf)))
    assert jnp.allclose(ybf, refbf, atol=4e-2, rtol=4e-2), f"bf16 max_err={errbf}"

    print("KERNEL_OK")
</pallas_src>

<mosaic_0001>
module attributes {stable_mosaic.version = 11 : i64} {
  func.func @_attention_block_kernel(%arg0: i32, %arg1: i32, %arg2: memref<1x64x64xf32, #tpu.memory_space<vmem>>, %arg3: memref<1x64xf32, #tpu.memory_space<vmem>>, %arg4: memref<1x64xf32, #tpu.memory_space<vmem>>, %arg5: memref<32x64xf32, #tpu.memory_space<vmem>>, %arg6: memref<64x64xf32, #tpu.memory_space<vmem>>, %arg7: memref<64x64xf32, #tpu.memory_space<vmem>>, %arg8: memref<64x64xf32, #tpu.memory_space<vmem>>, %arg9: memref<1x64xf32, #tpu.memory_space<vmem>>, %arg10: memref<1x64xf32, #tpu.memory_space<vmem>>, %arg11: memref<1x64xf32, #tpu.memory_space<vmem>>, %arg12: memref<64x64xf32, #tpu.memory_space<vmem>>, %arg13: memref<1x64xf32, #tpu.memory_space<vmem>>, %arg14: memref<1x32x64xf32, #tpu.memory_space<vmem>>, %arg15: memref<64x64xf32, #tpu.memory_space<vmem>>, %arg16: memref<64x64xf32, #tpu.memory_space<vmem>>, %arg17: memref<64x64xf32, #tpu.memory_space<vmem>>) attributes {dimension_semantics = [#tpu.dimension_semantics<parallel>, #tpu.dimension_semantics<arbitrary>], iteration_bounds = array<i64: 2, 2>, scalar_prefetch = 0 : i64, scratch_operands = 3 : i64, tpu.core_type = #tpu.core_type<tc>, window_params = [{transform_indices = @transform_0, window_bounds = array<i64: 1, 64, 64>}, {pipeline_mode = #tpu.pipeline_mode<synchronous>, transform_indices = @transform_1, window_bounds = array<i64: 1, 64>}, {pipeline_mode = #tpu.pipeline_mode<synchronous>, transform_indices = @transform_2, window_bounds = array<i64: 1, 64>}, {pipeline_mode = #tpu.pipeline_mode<synchronous>, transform_indices = @transform_3, window_bounds = array<i64: 32, 64>}, {pipeline_mode = #tpu.pipeline_mode<synchronous>, transform_indices = @transform_4, window_bounds = array<i64: 64, 64>}, {pipeline_mode = #tpu.pipeline_mode<synchronous>, transform_indices = @transform_5, window_bounds = array<i64: 64, 64>}, {pipeline_mode = #tpu.pipeline_mode<synchronous>, transform_indices = @transform_6, window_bounds = array<i64: 64, 64>}, {pipeline_mode = #tpu.pipeline_mode<synchronous>, transform_indices = @transform_7, window_bounds = array<i64: 1, 64>}, {pipeline_mode = #tpu.pipeline_mode<synchronous>, transform_indices = @transform_8, window_bounds = array<i64: 1, 64>}, {pipeline_mode = #tpu.pipeline_mode<synchronous>, transform_indices = @transform_9, window_bounds = array<i64: 1, 64>}, {pipeline_mode = #tpu.pipeline_mode<synchronous>, transform_indices = @transform_10, window_bounds = array<i64: 64, 64>}, {pipeline_mode = #tpu.pipeline_mode<synchronous>, transform_indices = @transform_11, window_bounds = array<i64: 1, 64>}, {transform_indices = @transform_12, window_bounds = array<i64: 1, 32, 64>}]} {
    %c0_i32 = arith.constant 0 : i32
    %0 = arith.cmpi eq, %arg1, %c0_i32 : i32
    %1 = arith.extui %0 : i1 to i32
    %c0_i32_0 = arith.constant 0 : i32
    %2 = arith.cmpi ne, %1, %c0_i32_0 : i32
    scf.if %2 {
      %c0_29 = arith.constant 0 : index
      %c0_30 = arith.constant 0 : index
      %c0_31 = arith.constant 0 : index
      %59 = vector.load %arg2[%c0_29, %c0_30, %c0_31] : memref<1x64x64xf32, #tpu.memory_space<vmem>>, vector<1x64x64xf32>
      %60 = vector.shape_cast %59 : vector<1x64x64xf32> to vector<64x64xf32>
      %c0_32 = arith.constant 0 : index
      %c0_33 = arith.constant 0 : index
      %61 = vector.load %arg5[%c0_32, %c0_33] : memref<32x64xf32, #tpu.memory_space<vmem>>, vector<32x64xf32>
      %cst_34 = arith.constant dense<0.000000e+00> : vector<64xf32>
      %62 = vector.multi_reduction <add>, %60, %cst_34 [0] : vector<64x64xf32> to vector<64xf32>
      %63 = vector.shape_cast %62 : vector<64xf32> to vector<1x64xf32>
      %cst_35 = arith.constant dense<0.000000e+00> : vector<1x32xf32>
      %64 = tpu.matmul %63, %61, %cst_35 {dimension_numbers = #tpu.dot_dimension_numbers<[1], [1], [0], [0], [0, 0, 1, 0], [], []>} : vector<1x64xf32>, vector<32x64xf32>, vector<1x32xf32> -> vector<1x32xf32>
      %cst_36 = arith.constant 1.280000e+02 : f32
      %65 = vector.broadcast %cst_36 : f32 to vector<1x32xf32>
      %66 = arith.divf %64, %65 : vector<1x32xf32>
      %cst_37 = arith.constant dense<0.000000e+00> : vector<1x64xf32>
      %67 = tpu.matmul %66, %61, %cst_37 {dimension_numbers = #tpu.dot_dimension_numbers<[1], [0], [0], [1], [0, 0, 1, 1], [], []>} : vector<1x32xf32>, vector<32x64xf32>, vector<1x64xf32> -> vector<1x64xf32>
      %68 = vector.broadcast %67 : vector<1x64xf32> to vector<64x64xf32>
      %69 = arith.subf %60, %68 : vector<64x64xf32>
      %70 = arith.mulf %69, %69 : vector<64x64xf32>
      %cst_38 = arith.constant dense<0.000000e+00> : vector<64xf32>
      %71 = vector.multi_reduction <add>, %70, %cst_38 [0] : vector<64x64xf32> to vector<64xf32>
      %72 = vector.shape_cast %71 : vector<64xf32> to vector<1x64xf32>
      %cst_39 = arith.constant dense<0.000000e+00> : vector<1x32xf32>
      %73 = tpu.matmul %72, %61, %cst_39 {dimension_numbers = #tpu.dot_dimension_numbers<[1], [1], [0], [0], [0, 0, 1, 0], [], []>} : vector<1x64xf32>, vector<32x64xf32>, vector<1x32xf32> -> vector<1x32xf32>
      %cst_40 = arith.constant 1.280000e+02 : f32
      %74 = vector.broadcast %cst_40 : f32 to vector<1x32xf32>
      %75 = arith.divf %73, %74 : vector<1x32xf32>
      %cst_41 = arith.constant 9.99999974E-6 : f32
      %76 = vector.broadcast %cst_41 : f32 to vector<1x32xf32>
      %77 = arith.addf %75, %76 : vector<1x32xf32>
      %78 = math.rsqrt %77 : vector<1x32xf32>
      %cst_42 = arith.constant dense<0.000000e+00> : vector<1x64xf32>
      %79 = tpu.matmul %78, %61, %cst_42 {dimension_numbers = #tpu.dot_dimension_numbers<[1], [0], [0], [1], [0, 0, 1, 1], [], []>} : vector<1x32xf32>, vector<32x64xf32>, vector<1x64xf32> -> vector<1x64xf32>
      %80 = vector.broadcast %79 : vector<1x64xf32> to vector<64x64xf32>
      %81 = arith.mulf %69, %80 : vector<64x64xf32>
      %c0_43 = arith.constant 0 : index
      %c0_44 = arith.constant 0 : index
      %82 = vector.load %arg3[%c0_43, %c0_44] : memref<1x64xf32, #tpu.memory_space<vmem>>, vector<1x64xf32>
      %83 = vector.broadcast %82 : vector<1x64xf32> to vector<64x64xf32>
      %84 = arith.mulf %81, %83 : vector<64x64xf32>
      %c0_45 = arith.constant 0 : index
      %c0_46 = arith.constant 0 : index
      %85 = vector.load %arg4[%c0_45, %c0_46] : memref<1x64xf32, #tpu.memory_space<vmem>>, vector<1x64xf32>
      %86 = vector.broadcast %85 : vector<1x64xf32> to vector<64x64xf32>
      %87 = arith.addf %84, %86 : vector<64x64xf32>
      %c0_47 = arith.constant 0 : index
      %c0_48 = arith.constant 0 : index
      %88 = vector.load %arg15[%c0_47, %c0_48] : memref<64x64xf32, #tpu.memory_space<vmem>>, vector<64x64xf32>
      tpu.vector_store %arg15[%c0_47, %c0_48], %87 {strides = array<i32>} : memref<64x64xf32, #tpu.memory_space<vmem>>, vector<64x64xf32>,
      %c0_49 = arith.constant 0 : index
      %c0_50 = arith.constant 0 : index
      %89 = vector.load %arg7[%c0_49, %c0_50] : memref<64x64xf32, #tpu.memory_space<vmem>>, vector<64x64xf32>
      %cst_51 = arith.constant dense<0.000000e+00> : vector<64x64xf32>
      %90 = tpu.matmul %87, %89, %cst_51 {dimension_numbers = #tpu.dot_dimension_numbers<[1], [0], [0], [1], [0, 0, 1, 1], [], []>} : vector<64x64xf32>, vector<64x64xf32>, vector<64x64xf32> -> vector<64x64xf32>
      %c0_52 = arith.constant 0 : index
      %c0_53 = arith.constant 0 : index
      %91 = vector.load %arg10[%c0_52, %c0_53] : memref<1x64xf32, #tpu.memory_space<vmem>>, vector<1x64xf32>
      %92 = vector.broadcast %91 : vector<1x64xf32> to vector<64x64xf32>
      %93 = arith.addf %90, %92 : vector<64x64xf32>
      %c0_54 = arith.constant 0 : index
      %c0_55 = arith.constant 0 : index
      %94 = vector.load %arg16[%c0_54, %c0_55] : memref<64x64xf32, #tpu.memory_space<vmem>>, vector<64x64xf32>
      tpu.vector_store %arg16[%c0_54, %c0_55], %93 {strides = array<i32>} : memref<64x64xf32, #tpu.memory_space<vmem>>, vector<64x64xf32>,
      %c0_56 = arith.constant 0 : index
      %c0_57 = arith.constant 0 : index
      %95 = vector.load %arg8[%c0_56, %c0_57] : memref<64x64xf32, #tpu.memory_space<vmem>>, vector<64x64xf32>
      %cst_58 = arith.constant dense<0.000000e+00> : vector<64x64xf32>
      %96 = tpu.matmul %87, %95, %cst_58 {dimension_numbers = #tpu.dot_dimension_numbers<[1], [0], [0], [1], [0, 0, 1, 1], [], []>} : vector<64x64xf32>, vector<64x64xf32>, vector<64x64xf32> -> vector<64x64xf32>
      %c0_59 = arith.constant 0 : index
      %c0_60 = arith.constant 0 : index
      %97 = vector.load %arg11[%c0_59, %c0_60] : memref<1x64xf32, #tpu.memory_space<vmem>>, vector<1x64xf32>
      %98 = vector.broadcast %97 : vector<1x64xf32> to vector<64x64xf32>
      %99 = arith.addf %96, %98 : vector<64x64xf32>
      %c0_61 = arith.constant 0 : index
      %c0_62 = arith.constant 0 : index
      %100 = vector.load %arg17[%c0_61, %c0_62] : memref<64x64xf32, #tpu.memory_space<vmem>>, vector<64x64xf32>
      tpu.vector_store %arg17[%c0_61, %c0_62], %99 {strides = array<i32>} : memref<64x64xf32, #tpu.memory_space<vmem>>, vector<64x64xf32>,
    } else {
    }
    %c32_i32 = arith.constant 32 : i32
    %3 = arith.muli %arg1, %c32_i32 : i32
    %4 = tpu.assume_multiple %3, 32 : i32
    %5 = arith.index_cast %4 : i32 to index
    %c0 = arith.constant 0 : index
    %6 = vector.load %arg15[%5, %c0] : memref<64x64xf32, #tpu.memory_space<vmem>>, vector<32x64xf32>
    %c0_1 = arith.constant 0 : index
    %c0_2 = arith.constant 0 : index
    %7 = vector.load %arg6[%c0_1, %c0_2] : memref<64x64xf32, #tpu.memory_space<vmem>>, vector<64x64xf32>
    %cst = arith.constant dense<0.000000e+00> : vector<32x64xf32>
    %8 = tpu.matmul %6, %7, %cst {dimension_numbers = #tpu.dot_dimension_numbers<[1], [0], [0], [1], [0, 0, 1, 1], [], []>} : vector<32x64xf32>, vector<64x64xf32>, vector<32x64xf32> -> vector<32x64xf32>
    %c0_3 = arith.constant 0 : index
    %c0_4 = arith.constant 0 : index
    %9 = vector.load %arg9[%c0_3, %c0_4] : memref<1x64xf32, #tpu.memory_space<vmem>>, vector<1x64xf32>
    %10 = vector.broadcast %9 : vector<1x64xf32> to vector<32x64xf32>
    %11 = arith.addf %8, %10 : vector<32x64xf32>
    %c0_5 = arith.constant 0 : index
    %c0_6 = arith.constant 0 : index
    %12 = vector.load %arg16[%c0_5, %c0_6] : memref<64x64xf32, #tpu.memory_space<vmem>>, vector<64x64xf32>
    %c0_7 = arith.constant 0 : index
    %c0_8 = arith.constant 0 : index
    %13 = vector.load %arg17[%c0_7, %c0_8] : memref<64x64xf32, #tpu.memory_space<vmem>>, vector<64x64xf32>
    %14 = vector.extract_strided_slice %11 {offsets = [0, 0], sizes = [32, 32], strides = [1, 1]} : vector<32x64xf32> to vector<32x32xf32>
    %15 = vector.extract_strided_slice %12 {offsets = [0, 0], sizes = [64, 32], strides = [1, 1]} : vector<64x64xf32> to vector<64x32xf32>
    %16 = vector.extract_strided_slice %13 {offsets = [0, 0], sizes = [64, 32], strides = [1, 1]} : vector<64x64xf32> to vector<64x32xf32>
    %cst_9 = arith.constant dense<0.000000e+00> : vector<32x64xf32>
    %17 = tpu.matmul %14, %15, %cst_9 {dimension_numbers = #tpu.dot_dimension_numbers<[1], [1], [0], [0], [0, 0, 1, 0], [], []>} : vector<32x32xf32>, vector<64x32xf32>, vector<32x64xf32> -> vector<32x64xf32>
    %cst_10 = arith.constant dense<0xFF800000> : vector<32xf32>
    %18 = vector.multi_reduction <maximumf>, %17, %cst_10 [1] : vector<32x64xf32> to vector<32xf32>
    %19 = vector.shape_cast %18 : vector<32xf32> to vector<32x1xf32>
    %20 = vector.broadcast %19 : vector<32x1xf32> to vector<32x64xf32>
    %21 = arith.subf %17, %20 : vector<32x64xf32>
    %22 = math.exp %21 : vector<32x64xf32>
    %cst_11 = arith.constant dense<0.000000e+00> : vector<32xf32>
    %23 = vector.multi_reduction <add>, %22, %cst_11 [1] : vector<32x64xf32> to vector<32xf32>
    %24 = vector.shape_cast %23 : vector<32xf32> to vector<32x1xf32>
    %cst_12 = arith.constant dense<0.000000e+00> : vector<32x32xf32>
    %25 = tpu.matmul %22, %16, %cst_12 {dimension_numbers = #tpu.dot_dimension_numbers<[1], [0], [0], [1], [0, 0, 1, 1], [], []>} : vector<32x64xf32>, vector<64x32xf32>, vector<32x32xf32> -> vector<32x32xf32>
    %cst_13 = arith.constant 1.000000e+00 : f32
    %26 = vector.broadcast %cst_13 : f32 to vector<32x1xf32>
    %27 = arith.divf %26, %24 : vector<32x1xf32>
    %28 = vector.broadcast %27 : vector<32x1xf32> to vector<32x32xf32>
    %29 = arith.mulf %25, %28 : vector<32x32xf32>
    %30 = vector.extract_strided_slice %11 {offsets = [0, 32], sizes = [32, 32], strides = [1, 1]} : vector<32x64xf32> to vector<32x32xf32>
    %31 = vector.extract_strided_slice %12 {offsets = [0, 32], sizes = [64, 32], strides = [1, 1]} : vector<64x64xf32> to vector<64x32xf32>
    %32 = vector.extract_strided_slice %13 {offsets = [0, 32], sizes = [64, 32], strides = [1, 1]} : vector<64x64xf32> to vector<64x32xf32>
    %cst_14 = arith.constant dense<0.000000e+00> : vector<32x64xf32>
    %33 = tpu.matmul %30, %31, %cst_14 {dimension_numbers = #tpu.dot_dimension_numbers<[1], [1], [0], [0], [0, 0, 1, 0], [], []>} : vector<32x32xf32>, vector<64x32xf32>, vector<32x64xf32> -> vector<32x64xf32>
    %cst_15 = arith.constant dense<0xFF800000> : vector<32xf32>
    %34 = vector.multi_reduction <maximumf>, %33, %cst_15 [1] : vector<32x64xf32> to vector<32xf32>
    %35 = vector.shape_cast %34 : vector<32xf32> to vector<32x1xf32>
    %36 = vector.broadcast %35 : vector<32x1xf32> to vector<32x64xf32>
    %37 = arith.subf %33, %36 : vector<32x64xf32>
    %38 = math.exp %37 : vector<32x64xf32>
    %cst_16 = arith.constant dense<0.000000e+00> : vector<32xf32>
    %39 = vector.multi_reduction <add>, %38, %cst_16 [1] : vector<32x64xf32> to vector<32xf32>
    %40 = vector.shape_cast %39 : vector<32xf32> to vector<32x1xf32>
    %cst_17 = arith.constant dense<0.000000e+00> : vector<32x32xf32>
    %41 = tpu.matmul %38, %32, %cst_17 {dimension_numbers = #tpu.dot_dimension_numbers<[1], [0], [0], [1], [0, 0, 1, 1], [], []>} : vector<32x64xf32>, vector<64x32xf32>, vector<32x32xf32> -> vector<32x32xf32>
    %cst_18 = arith.constant 1.000000e+00 : f32
    %42 = vector.broadcast %cst_18 : f32 to vector<32x1xf32>
    %43 = arith.divf %42, %40 : vector<32x1xf32>
    %44 = vector.broadcast %43 : vector<32x1xf32> to vector<32x32xf32>
    %45 = arith.mulf %41, %44 : vector<32x32xf32>
    %46 = tpu.concatenate %29, %45 in 1 : vector<32x32xf32>, vector<32x32xf32> -> vector<32x64xf32>
    %c0_19 = arith.constant 0 : index
    %47 = arith.index_cast %4 : i32 to index
    %c0_20 = arith.constant 0 : index
    %48 = vector.load %arg2[%c0_19, %47, %c0_20] : memref<1x64x64xf32, #tpu.memory_space<vmem>>, vector<1x32x64xf32>
    %49 = vector.shape_cast %48 : vector<1x32x64xf32> to vector<32x64xf32>
    %c0_21 = arith.constant 0 : index
    %c0_22 = arith.constant 0 : index
    %50 = vector.load %arg13[%c0_21, %c0_22] : memref<1x64xf32, #tpu.memory_space<vmem>>, vector<1x64xf32>
    %51 = vector.broadcast %50 : vector<1x64xf32> to vector<32x64xf32>
    %52 = arith.addf %49, %51 : vector<32x64xf32>
    %c0_23 = arith.constant 0 : index
    %c0_24 = arith.constant 0 : index
    %53 = vector.load %arg12[%c0_23, %c0_24] : memref<64x64xf32, #tpu.memory_space<vmem>>, vector<64x64xf32>
    %cst_25 = arith.constant dense<0.000000e+00> : vector<32x64xf32>
    %54 = tpu.matmul %46, %53, %cst_25 {dimension_numbers = #tpu.dot_dimension_numbers<[1], [0], [0], [1], [0, 0, 1, 1], [], []>} : vector<32x64xf32>, vector<64x64xf32>, vector<32x64xf32> -> vector<32x64xf32>
    %55 = arith.addf %52, %54 : vector<32x64xf32>
    %c0_26 = arith.constant 0 : index
    %c0_27 = arith.constant 0 : index
    %c0_28 = arith.constant 0 : index
    %56 = vector.load %arg14[%c0_26, %c0_27, %c0_28] : memref<1x32x64xf32, #tpu.memory_space<vmem>>, vector<1x32x64xf32>
    %57 = vector.shape_cast %56 : vector<1x32x64xf32> to vector<32x64xf32>
    %58 = vector.shape_cast %55 : vector<32x64xf32> to vector<1x32x64xf32>
    tpu.vector_store %arg14[%c0_26, %c0_27, %c0_28], %58 {strides = array<i32>} : memref<1x32x64xf32, #tpu.memory_space<vmem>>, vector<1x32x64xf32>,
    return
  }
  func.func @transform_0(%arg0: i32, %arg1: i32) -> (i32, i32, i32) {
    %c0_i32 = arith.constant 0 : i32
    %c0_i32_0 = arith.constant 0 : i32
    %c0_i32_1 = arith.constant 0 : i32
    return %arg0, %c0_i32, %c0_i32_0 : i32, i32, i32
  }
  func.func @transform_1(%arg0: i32, %arg1: i32) -> (i32, i32) {
    %c0_i32 = arith.constant 0 : i32
    %c0_i32_0 = arith.constant 0 : i32
    %c0_i32_1 = arith.constant 0 : i32
    return %c0_i32, %c0_i32_0 : i32, i32
  }
  func.func @transform_2(%arg0: i32, %arg1: i32) -> (i32, i32) {
    %c0_i32 = arith.constant 0 : i32
    %c0_i32_0 = arith.constant 0 : i32
    %c0_i32_1 = arith.constant 0 : i32
    return %c0_i32, %c0_i32_0 : i32, i32
  }
  func.func @transform_3(%arg0: i32, %arg1: i32) -> (i32, i32) {
    %c0_i32 = arith.constant 0 : i32
    %c0_i32_0 = arith.constant 0 : i32
    %c0_i32_1 = arith.constant 0 : i32
    return %c0_i32, %c0_i32_0 : i32, i32
  }
  func.func @transform_4(%arg0: i32, %arg1: i32) -> (i32, i32) {
    %c0_i32 = arith.constant 0 : i32
    %c0_i32_0 = arith.constant 0 : i32
    %c0_i32_1 = arith.constant 0 : i32
    return %c0_i32, %c0_i32_0 : i32, i32
  }
  func.func @transform_5(%arg0: i32, %arg1: i32) -> (i32, i32) {
    %c0_i32 = arith.constant 0 : i32
    %c0_i32_0 = arith.constant 0 : i32
    %c0_i32_1 = arith.constant 0 : i32
    return %c0_i32, %c0_i32_0 : i32, i32
  }
  func.func @transform_6(%arg0: i32, %arg1: i32) -> (i32, i32) {
    %c0_i32 = arith.constant 0 : i32
    %c0_i32_0 = arith.constant 0 : i32
    %c0_i32_1 = arith.constant 0 : i32
    return %c0_i32, %c0_i32_0 : i32, i32
  }
  func.func @transform_7(%arg0: i32, %arg1: i32) -> (i32, i32) {
    %c0_i32 = arith.constant 0 : i32
    %c0_i32_0 = arith.constant 0 : i32
    %c0_i32_1 = arith.constant 0 : i32
    return %c0_i32, %c0_i32_0 : i32, i32
  }
  func.func @transform_8(%arg0: i32, %arg1: i32) -> (i32, i32) {
    %c0_i32 = arith.constant 0 : i32
    %c0_i32_0 = arith.constant 0 : i32
    %c0_i32_1 = arith.constant 0 : i32
    return %c0_i32, %c0_i32_0 : i32, i32
  }
  func.func @transform_9(%arg0: i32, %arg1: i32) -> (i32, i32) {
    %c0_i32 = arith.constant 0 : i32
    %c0_i32_0 = arith.constant 0 : i32
    %c0_i32_1 = arith.constant 0 : i32
    return %c0_i32, %c0_i32_0 : i32, i32
  }
  func.func @transform_10(%arg0: i32, %arg1: i32) -> (i32, i32) {
    %c0_i32 = arith.constant 0 : i32
    %c0_i32_0 = arith.constant 0 : i32
    %c0_i32_1 = arith.constant 0 : i32
    return %c0_i32, %c0_i32_0 : i32, i32
  }
  func.func @transform_11(%arg0: i32, %arg1: i32) -> (i32, i32) {
    %c0_i32 = arith.constant 0 : i32
    %c0_i32_0 = arith.constant 0 : i32
    %c0_i32_1 = arith.constant 0 : i32
    return %c0_i32, %c0_i32_0 : i32, i32
  }
  func.func @transform_12(%arg0: i32, %arg1: i32) -> (i32, i32, i32) {
    %c0_i32 = arith.constant 0 : i32
    %c0_i32_0 = arith.constant 0 : i32
    return %arg0, %arg1, %c0_i32 : i32, i32, i32
  }
}

</mosaic_0001>

<llo_original>
// kernel: tpu_custom_call.1
$region0: #{tpu_custom_call.1}
  #allocation0 [shape = 'u32[]', space=smem, size = 0x4, offset = 0x4, fixed_abs, tag = 'smem constant byte address 0x4 - core index']
  #allocation1 [shape = 'u32[72,128]{1,0:T(1,128)}', space=vmem, size = 0x9000, scoped, tag = 'internal scratch']
  #allocation2 [shape = 'f32[64,64]{1,0:T(8,128)}', space=vmem, size = 0x8000, scoped, tag = 'scratch operand']
  #allocation3 [shape = 'f32[64,64]{1,0:T(8,128)}', space=vmem, size = 0x8000, scoped, tag = 'scratch operand']
  #allocation4 [shape = 'f32[64,64]{1,0:T(8,128)}', space=vmem, size = 0x8000, scoped, tag = 'scratch operand']
  %s0 = inlined_call_operand.hbm [shape: f32[2,64,64], index: 0, kind: input, shape index: {}]
  %s1 = inlined_call_operand.hbm [shape: f32[1,64], index: 1, kind: input, shape index: {}]
  %s2 = inlined_call_operand.vmem [shape: f32[1,64], index: 2, kind: input, shape index: {}]
  %s3 = inlined_call_operand.hbm [shape: f32[32,64], index: 3, kind: input, shape index: {}]
  %s4 = inlined_call_operand.hbm [shape: f32[64,64], index: 4, kind: input, shape index: {}]
  %s5 = inlined_call_operand.hbm [shape: f32[64,64], index: 5, kind: input, shape index: {}]
  %s6 = inlined_call_operand.hbm [shape: f32[64,64], index: 6, kind: input, shape index: {}]
  %s7 = inlined_call_operand.vmem [shape: f32[1,64], index: 7, kind: input, shape index: {}]
  %s8 = inlined_call_operand.vmem [shape: f32[1,64], index: 8, kind: input, shape index: {}]
  %s9 = inlined_call_operand.vmem [shape: f32[1,64], index: 9, kind: input, shape index: {}]
  %s10 = inlined_call_operand.hbm [shape: f32[64,64], index: 10, kind: input, shape index: {}]
  %s11 = inlined_call_operand.vmem [shape: f32[1,64], index: 11, kind: input, shape index: {}]
  %s12 = inlined_call_operand.hbm [shape: f32[2,64,64], index: 12, kind: output, shape index: {}]
  %s13 = sld [smem:[#allocation0]]
  $region113: #{tpu_custom_call.1} parent=0
    _
  %s15 = ssub.s32 1, %s13
  %s16 = scalar_select 0, %s15, %s13
  $region1: #{tpu_custom_call.1} parent=0
    #allocation5 [shape = 'u8[65536]{0}', space=vmem, size = 0x10000, scoped, tag = 'input window, operand 0']
    #allocation6 [shape = 's32[2]{0}', space=sflag, size = 0x8, scoped, tag = 'scoped memory for tpu_custom_call.1']
    #allocation7 [shape = 's32[2]{0}', space=sflag, size = 0x8, scoped, tag = 'scoped memory for tpu_custom_call.1']
    #allocation8 [shape = 'u8[512]{0}', space=vmem, size = 0x400, scoped, tag = 'input window, operand 1, single buffered']
    #allocation9 [shape = 's32[1]{0}', space=sflag, size = 0x4, scoped, tag = 'scoped memory for tpu_custom_call.1']
    #allocation10 [shape = 'u8[16384]{0}', space=vmem, size = 0x4000, scoped, tag = 'input window, operand 3, single buffered']
    #allocation11 [shape = 'u8[32768]{0}', space=vmem, size = 0x8000, scoped, tag = 'input window, operand 4, single buffered']
    #allocation12 [shape = 's32[1]{0}', space=sflag, size = 0x4, scoped, tag = 'scoped memory for tpu_custom_call.1']
    #allocation13 [shape = 'u8[32768]{0}', space=vmem, size = 0x8000, scoped, tag = 'input window, operand 5, single buffered']
    #allocation14 [shape = 'u8[32768]{0}', space=vmem, size = 0x8000, scoped, tag = 'input window, operand 6, single buffered']
    #allocation15 [shape = 's32[1]{0}', space=sflag, size = 0x4, scoped, tag = 'scoped memory for tpu_custom_call.1']
    #allocation16 [shape = 'u8[32768]{0}', space=vmem, size = 0x8000, scoped, tag = 'input window, operand 10, single buffered']
    #allocation17 [shape = 'u8[32768]{0}', space=vmem, size = 0x8000, scoped, tag = 'output window, operand 0']
    %17 = vsyncpa [#allocation6], 0
    %s18 = scalar_lea.sflag [#allocation6], 1
    %19 = vsyncpa %s18, 0
    %20 = vsyncpa [#allocation9], 0
    %21 = vsyncpa [#allocation12], 0
    %22 = vsyncpa [#allocation15], 0
    %23 = vsyncpa [#allocation7], 0
    %s24 = scalar_lea.sflag [#allocation7], 1
    %25 = vsyncpa %s24, 0
    loop: start=0, step=1, limit=6
    $region2: #{tpu_custom_call.1} parent=1 // loop_pre_header
      _
    $region3: #{tpu_custom_call.1} parent=1 // loop_header
      %s27 = sphi 0, %s31
      %p28 = scmp.ge.s32.totalorder %s27, 6
      %s34 = sphi 0, %s46
      %s35 = sphi 0, %s42
      %s36 = sphi 0, %s34
      %s37 = sphi 0, %s35
      %s38 = sphi 0, %s36
      %s39 = sphi 0, %s37
      %s49 = sphi 0, %s51
      %s52 = sphi 0, %s49
      %s53 = sphi 0, %s52
      %s69 = sphi 0, %s53
      %s73 = sphi 0, %s73
      %s75 = sphi 0, %s73
      %s76 = sphi 0, %s75
      %s90 = sphi 0, %s76
      %s94 = sphi 0, %s94
      %s96 = sphi 0, %s94
      %s97 = sphi 0, %s96
      %s111 = sphi 0, %s97
      %s115 = sphi 0, %s115
      %s117 = sphi 0, %s115
      %s118 = sphi 0, %s117
      %s132 = sphi 0, %s118
      %s136 = sphi 0, %s136
      %s138 = sphi 0, %s136
      %s139 = sphi 0, %s138
      %s153 = sphi 0, %s139
      %s157 = sphi 0, %s157
      %s159 = sphi 0, %s157
      %s160 = sphi 0, %s159
      %s174 = sphi 0, %s160
      %s178 = sphi 0, %s178
      %s180 = sphi 0, %s178
      %s181 = sphi 0, %s180
      %s195 = sphi 0, %s181
      %s199 = sphi 0, %s199
      %s201 = sphi 0, %s199
      %s202 = sphi 0, %s201
      %s216 = sphi 0, %s202
      %s220 = sphi 0, %s220
      %s222 = sphi 0, %s220
      %s223 = sphi 0, %s222
      %s237 = sphi 0, %s223
      %s241 = sphi 0, %s241
      %s243 = sphi 0, %s241
      %s244 = sphi 0, %s243
      %s258 = sphi 0, %s244
      %s262 = sphi 0, %s262
      %s264 = sphi 0, %s262
      %s265 = sphi 0, %s264
      %s279 = sphi 0, %s265
      %s283 = sphi 0, %s283
      %s285 = sphi 0, %s283
      %s286 = sphi 0, %s285
      %s300 = sphi 0, %s286
      %s308 = sphi 0, %s310
      %s311 = sphi 0, %s308
      %s312 = sphi 0, %s311
      %s328 = sphi 0, %s312
    $region4: #{tpu_custom_call.1} parent=1 // loop_header_branch
      %30 = sbr.rel (%p28) target = $region8
    $region5: #{tpu_custom_call.1} parent=1 // loop_body
      %s32 = ssub.s32 %s27, 1
      %s33 = ssub.s32 %s27, 2
      %s40 = sadd.s32 1, %s35
      %p41 = scmp.ge.s32.totalorder %s40, 2
      %s42 = scalar_select %p41, 0, %s40
      %s43 = sadd.s32 1, %s34
      %s44 = scalar_select %p41, %s43, %s34
      %p45 = scmp.ge.s32.totalorder %s44, 2
      %s46 = scalar_select %p45, 0, %s44
      %s47 = ssub.s32 %s34, %s46
      %p48 = scmp.eq.s32.totalorder %s47, 0
      %s50 = sadd.s32 %s49, 1
      %s51 = scalar_select %p48, %s49, %s50
      %p54 = pneg %p48
      %p55 = scmp.eq.s32.totalorder %s27, 3
      %p56 = por %p54, %p55
      %p57 = scmp.ne.s32.totalorder %s49, %s52
      %p58 = scmp.eq.s32.totalorder %s27, 0
      %p59 = por %p57, %p58
      %p60 = scmp.ne.s32.totalorder %s49, %s52
      %p61 = scmp.eq.s32.totalorder %s32, 3
      %p62 = por %p60, %p61
      %p63 = scmp.ne.s32.totalorder %s52, %s53
      %p64 = scmp.eq.s32.totalorder %s32, 0
      %p65 = por %p63, %p64
      %p66 = scmp.ne.s32.totalorder %s52, %s53
      %p67 = scmp.eq.s32.totalorder %s33, 3
      %p68 = por %p66, %p67
      %p70 = scmp.ne.s32.totalorder %s53, %s69
      %p71 = scmp.eq.s32.totalorder %s33, 0
      %p72 = por %p70, %p71
      %s74 = sadd.s32 %s73, 1
      %p77 = scmp.eq.s32.totalorder %s27, 3
      %p78 = scmp.ne.s32.totalorder %s73, %s75
      %p79 = scmp.eq.s32.totalorder %s27, 0
      %p80 = por %p78, %p79
      %p81 = scmp.ne.s32.totalorder %s73, %s75
      %p82 = scmp.eq.s32.totalorder %s32, 3
      %p83 = por %p81, %p82
      %p84 = scmp.ne.s32.totalorder %s75, %s76
      %p85 = scmp.eq.s32.totalorder %s32, 0
      %p86 = por %p84, %p85
      %p87 = scmp.ne.s32.totalorder %s75, %s76
      %p88 = scmp.eq.s32.totalorder %s33, 3
      %p89 = por %p87, %p88
      %p91 = scmp.ne.s32.totalorder %s76, %s90
      %p92 = scmp.eq.s32.totalorder %s33, 0
      %p93 = por %p91, %p92
      %s95 = sadd.s32 %s94, 1
      %p98 = scmp.eq.s32.totalorder %s27, 3
      %p99 = scmp.ne.s32.totalorder %s94, %s96
      %p100 = scmp.eq.s32.totalorder %s27, 0
      %p101 = por %p99, %p100
      %p102 = scmp.ne.s32.totalorder %s94, %s96
      %p103 = scmp.eq.s32.totalorder %s32, 3
      %p104 = por %p102, %p103
      %p105 = scmp.ne.s32.totalorder %s96, %s97
      %p106 = scmp.eq.s32.totalorder %s32, 0
      %p107 = por %p105, %p106
      %p108 = scmp.ne.s32.totalorder %s96, %s97
      %p109 = scmp.eq.s32.totalorder %s33, 3
      %p110 = por %p108, %p109
      %p112 = scmp.ne.s32.totalorder %s97, %s111
      %p113 = scmp.eq.s32.totalorder %s33, 0
      %p114 = por %p112, %p113
      %s116 = sadd.s32 %s115, 1
      %p119 = scmp.eq.s32.totalorder %s27, 3
      %p120 = scmp.ne.s32.totalorder %s115, %s117
      %p121 = scmp.eq.s32.totalorder %s27, 0
      %p122 = por %p120, %p121
      %p123 = scmp.ne.s32.totalorder %s115, %s117
      %p124 = scmp.eq.s32.totalorder %s32, 3
      %p125 = por %p123, %p124
      %p126 = scmp.ne.s32.totalorder %s117, %s118
      %p127 = scmp.eq.s32.totalorder %s32, 0
      %p128 = por %p126, %p127
      %p129 = scmp.ne.s32.totalorder %s117, %s118
      %p130 = scmp.eq.s32.totalorder %s33, 3
      %p131 = por %p129, %p130
      %p133 = scmp.ne.s32.totalorder %s118, %s132
      %p134 = scmp.eq.s32.totalorder %s33, 0
      %p135 = por %p133, %p134
      %s137 = sadd.s32 %s136, 1
      %p140 = scmp.eq.s32.totalorder %s27, 3
      %p141 = scmp.ne.s32.totalorder %s136, %s138
      %p142 = scmp.eq.s32.totalorder %s27, 0
      %p143 = por %p141, %p142
      %p144 = scmp.ne.s32.totalorder %s136, %s138
      %p145 = scmp.eq.s32.totalorder %s32, 3
      %p146 = por %p144, %p145
      %p147 = scmp.ne.s32.totalorder %s138, %s139
      %p148 = scmp.eq.s32.totalorder %s32, 0
      %p149 = por %p147, %p148
      %p150 = scmp.ne.s32.totalorder %s138, %s139
      %p151 = scmp.eq.s32.totalorder %s33, 3
      %p152 = por %p150, %p151
      %p154 = scmp.ne.s32.totalorder %s139, %s153
      %p155 = scmp.eq.s32.totalorder %s33, 0
      %p156 = por %p154, %p155
      %s158 = sadd.s32 %s157, 1
      %p161 = scmp.eq.s32.totalorder %s27, 3
      %p162 = scmp.ne.s32.totalorder %s157, %s159
      %p163 = scmp.eq.s32.totalorder %s27, 0
      %p164 = por %p162, %p163
      %p165 = scmp.ne.s32.totalorder %s157, %s159
      %p166 = scmp.eq.s32.totalorder %s32, 3
      %p167 = por %p165, %p166
      %p168 = scmp.ne.s32.totalorder %s159, %s160
      %p169 = scmp.eq.s32.totalorder %s32, 0
      %p170 = por %p168, %p169
      %p171 = scmp.ne.s32.totalorder %s159, %s160
      %p172 = scmp.eq.s32.totalorder %s33, 3
      %p173 = por %p171, %p172
      %p175 = scmp.ne.s32.totalorder %s160, %s174
      %p176 = scmp.eq.s32.totalorder %s33, 0
      %p177 = por %p175, %p176
      %s179 = sadd.s32 %s178, 1
      %p182 = scmp.eq.s32.totalorder %s27, 3
      %p183 = scmp.ne.s32.totalorder %s178, %s180
      %p184 = scmp.eq.s32.totalorder %s27, 0
      %p185 = por %p183, %p184
      %p186 = scmp.ne.s32.totalorder %s178, %s180
      %p187 = scmp.eq.s32.totalorder %s32, 3
      %p188 = por %p186, %p187
      %p189 = scmp.ne.s32.totalorder %s180, %s181
      %p190 = scmp.eq.s32.totalorder %s32, 0
      %p191 = por %p189, %p190
      %p192 = scmp.ne.s32.totalorder %s180, %s181
      %p193 = scmp.eq.s32.totalorder %s33, 3
      %p194 = por %p192, %p193
      %p196 = scmp.ne.s32.totalorder %s181, %s195
      %p197 = scmp.eq.s32.totalorder %s33, 0
      %p198 = por %p196, %p197
      %s200 = sadd.s32 %s199, 1
      %p203 = scmp.eq.s32.totalorder %s27, 3
      %p204 = scmp.ne.s32.totalorder %s199, %s201
      %p205 = scmp.eq.s32.totalorder %s27, 0
      %p206 = por %p204, %p205
      %p207 = scmp.ne.s32.totalorder %s199, %s201
      %p208 = scmp.eq.s32.totalorder %s32, 3
      %p209 = por %p207, %p208
      %p210 = scmp.ne.s32.totalorder %s201, %s202
      %p211 = scmp.eq.s32.totalorder %s32, 0
      %p212 = por %p210, %p211
      %p213 = scmp.ne.s32.totalorder %s201, %s202
      %p214 = scmp.eq.s32.totalorder %s33, 3
      %p215 = por %p213, %p214
      %p217 = scmp.ne.s32.totalorder %s202, %s216
      %p218 = scmp.eq.s32.totalorder %s33, 0
      %p219 = por %p217, %p218
      %s221 = sadd.s32 %s220, 1
      %p224 = scmp.eq.s32.totalorder %s27, 3
      %p225 = scmp.ne.s32.totalorder %s220, %s222
      %p226 = scmp.eq.s32.totalorder %s27, 0
      %p227 = por %p225, %p226
      %p228 = scmp.ne.s32.totalorder %s220, %s222
      %p229 = scmp.eq.s32.totalorder %s32, 3
      %p230 = por %p228, %p229
      %p231 = scmp.ne.s32.totalorder %s222, %s223
      %p232 = scmp.eq.s32.totalorder %s32, 0
      %p233 = por %p231, %p232
      %p234 = scmp.ne.s32.totalorder %s222, %s223
      %p235 = scmp.eq.s32.totalorder %s33, 3
      %p236 = por %p234, %p235
      %p238 = scmp.ne.s32.totalorder %s223, %s237
      %p239 = scmp.eq.s32.totalorder %s33, 0
      %p240 = por %p238, %p239
      %s242 = sadd.s32 %s241, 1
      %p245 = scmp.eq.s32.totalorder %s27, 3
      %p246 = scmp.ne.s32.totalorder %s241, %s243
      %p247 = scmp.eq.s32.totalorder %s27, 0
      %p248 = por %p246, %p247
      %p249 = scmp.ne.s32.totalorder %s241, %s243
      %p250 = scmp.eq.s32.totalorder %s32, 3
      %p251 = por %p249, %p250
      %p252 = scmp.ne.s32.totalorder %s243, %s244
      %p253 = scmp.eq.s32.totalorder %s32, 0
      %p254 = por %p252, %p253
      %p255 = scmp.ne.s32.totalorder %s243, %s244
      %p256 = scmp.eq.s32.totalorder %s33, 3
      %p257 = por %p255, %p256
      %p259 = scmp.ne.s32.totalorder %s244, %s258
      %p260 = scmp.eq.s32.totalorder %s33, 0
      %p261 = por %p259, %p260
      %s263 = sadd.s32 %s262, 1
      %p266 = scmp.eq.s32.totalorder %s27, 3
      %p267 = scmp.ne.s32.totalorder %s262, %s264
      %p268 = scmp.eq.s32.totalorder %s27, 0
      %p269 = por %p267, %p268
      %p270 = scmp.ne.s32.totalorder %s262, %s264
      %p271 = scmp.eq.s32.totalorder %s32, 3
      %p272 = por %p270, %p271
      %p273 = scmp.ne.s32.totalorder %s264, %s265
      %p274 = scmp.eq.s32.totalorder %s32, 0
      %p275 = por %p273, %p274
      %p276 = scmp.ne.s32.totalorder %s264, %s265
      %p277 = scmp.eq.s32.totalorder %s33, 3
      %p278 = por %p276, %p277
      %p280 = scmp.ne.s32.totalorder %s265, %s279
      %p281 = scmp.eq.s32.totalorder %s33, 0
      %p282 = por %p280, %p281
      %s284 = sadd.s32 %s283, 1
      %p287 = scmp.eq.s32.totalorder %s27, 3
      %p288 = scmp.ne.s32.totalorder %s283, %s285
      %p289 = scmp.eq.s32.totalorder %s27, 0
      %p290 = por %p288, %p289
      %p291 = scmp.ne.s32.totalorder %s283, %s285
      %p292 = scmp.eq.s32.totalorder %s32, 3
      %p293 = por %p291, %p292
      %p294 = scmp.ne.s32.totalorder %s285, %s286
      %p295 = scmp.eq.s32.totalorder %s32, 0
      %p296 = por %p294, %p295
      %p297 = scmp.ne.s32.totalorder %s285, %s286
      %p298 = scmp.eq.s32.totalorder %s33, 3
      %p299 = por %p297, %p298
      %p301 = scmp.ne.s32.totalorder %s286, %s300
      %p302 = scmp.eq.s32.totalorder %s33, 0
      %p303 = por %p301, %p302
      %s304 = ssub.s32 %s34, %s46
      %s305 = ssub.s32 %s35, %s42
      %s306 = sor.u32 %s304, %s305
      %p307 = scmp.eq.s32.totalorder %s306, 0
      %s309 = sadd.s32 %s308, 1
      %s310 = scalar_select %p307, %s308, %s309
      %p313 = pneg %p307
      %p314 = scmp.eq.s32.totalorder %s27, 3
      %p315 = por %p313, %p314
      %p316 = scmp.ne.s32.totalorder %s308, %s311
      %p317 = scmp.eq.s32.totalorder %s27, 0
      %p318 = por %p316, %p317
      %p319 = scmp.ne.s32.totalorder %s308, %s311
      %p320 = scmp.eq.s32.totalorder %s32, 3
      %p321 = por %p319, %p320
      %p322 = scmp.ne.s32.totalorder %s311, %s312
      %p323 = scmp.eq.s32.totalorder %s32, 0
      %p324 = por %p322, %p323
      %p325 = scmp.ne.s32.totalorder %s311, %s312
      %p326 = scmp.eq.s32.totalorder %s33, 3
      %p327 = por %p325, %p326
      %p329 = scmp.ne.s32.totalorder %s312, %s328
      %p330 = scmp.eq.s32.totalorder %s33, 0
      %p331 = por %p329, %p330
      %p332 = scmp.le.s32.totalorder 1, %s27
      %p333 = scmp.lt.s32.totalorder %s27, 5
      %p334 = pnand %p332, %p333
      %p335 = pneg %p334
      // Predicated region
      $region9: #{tpu_custom_call.1} parent=5 // pred_check
        _
      $region10: #{tpu_custom_call.1} parent=5 // pred_check_branch
        %337 = sbr.rel (%p334) target = $region12
      $region11: #{tpu_custom_call.1} parent=5 // pred_region
        %s338 = ssub.s32 %s27, 1
        // Predicated region
        $region13: #{tpu_custom_call.1} parent=11 // pred_check
          %p339 = pneg %p86
        $region14: #{tpu_custom_call.1} parent=11 // pred_check_branch
          %341 = sbr.rel (%p339) target = $region16
        $region15: #{tpu_custom_call.1} parent=11 // pred_region
          %343 = vsyncadd [#allocation9], 0
          %s345 = sshll.u32 %s1, 4
          %s346 = int_to_ptr.hbm [resolvable:$true] %s345
          %s347 = sshll.u32 [#allocation8], 4
          %s348 = int_to_ptr.vmem [resolvable:$true] %s347
          %350 = dma.hbm_to_vmem [thread:$0]  %s346, 16, %s348, [#allocation9]
        $region16: #{tpu_custom_call.1} parent=11 // pred_fallthru
          _
        // Predicated region
        $region17: #{tpu_custom_call.1} parent=11 // pred_check
          %p351 = pneg %p107
        $region18: #{tpu_custom_call.1} parent=11 // pred_check_branch
          %353 = sbr.rel (%p351) target = $region20
        $region19: #{tpu_custom_call.1} parent=11 // pred_region
          _
        $region20: #{tpu_custom_call.1} parent=11 // pred_fallthru
          _
        // Predicated region
        $region21: #{tpu_custom_call.1} parent=11 // pred_check
          %p354 = pneg %p128
        $region22: #{tpu_custom_call.1} parent=11 // pred_check_branch
          %356 = sbr.rel (%p354) target = $region24
        $region23: #{tpu_custom_call.1} parent=11 // pred_region
          %358 = vsyncadd [#allocation9], 0
          %s359 = sshll.u32 %s3, 4
          %s360 = int_to_ptr.hbm [resolvable:$true] %s359
          %s361 = sshll.u32 [#allocation10], 4
          %s362 = int_to_ptr.vmem [resolvable:$true] %s361
          %367 = dma.hbm_to_vmem [thread:$0]  %s360, 512, %s362, [#allocation9], 128, 128, 8
        $region24: #{tpu_custom_call.1} parent=11 // pred_fallthru
          _
        // Predicated region
        $region25: #{tpu_custom_call.1} parent=11 // pred_check
          %p368 = pneg %p149
        $region26: #{tpu_custom_call.1} parent=11 // pred_check_branch
          %370 = sbr.rel (%p368) target = $region28
        $region27: #{tpu_custom_call.1} parent=11 // pred_region
          %372 = vsyncadd [#allocation12], 0
          %s373 = sshll.u32 %s4, 4
          %s374 = int_to_ptr.hbm [resolvable:$true] %s373
          %s375 = sshll.u32 [#allocation11], 4
          %s376 = int_to_ptr.vmem [resolvable:$true] %s375
          %381 = dma.hbm_to_vmem [thread:$0]  %s374, 1024, %s376, [#allocation12], 128, 128, 8
        $region28: #{tpu_custom_call.1} parent=11 // pred_fallthru
          _
        // Predicated region
        $region29: #{tpu_custom_call.1} parent=11 // pred_check
          %p382 = pneg %p170
        $region30: #{tpu_custom_call.1} parent=11 // pred_check_branch
          %384 = sbr.rel (%p382) target = $region32
        $region31: #{tpu_custom_call.1} parent=11 // pred_region
          %386 = vsyncadd [#allocation12], 0
          %s387 = sshll.u32 %s5, 4
          %s388 = int_to_ptr.hbm [resolvable:$true] %s387
          %s389 = sshll.u32 [#allocation13], 4
          %s390 = int_to_ptr.vmem [resolvable:$true] %s389
          %395 = dma.hbm_to_vmem [thread:$0]  %s388, 1024, %s390, [#allocation12], 128, 128, 8
        $region32: #{tpu_custom_call.1} parent=11 // pred_fallthru
          _
        // Predicated region
        $region33: #{tpu_custom_call.1} parent=11 // pred_check
          %p396 = pneg %p191
        $region34: #{tpu_custom_call.1} parent=11 // pred_check_branch
          %398 = sbr.rel (%p396) target = $region36
        $region35: #{tpu_custom_call.1} parent=11 // pred_region
          %400 = vsyncadd [#allocation15], 0
          %s401 = sshll.u32 %s6, 4
          %s402 = int_to_ptr.hbm [resolvable:$true] %s401
          %s403 = sshll.u32 [#allocation14], 4
          %s404 = int_to_ptr.vmem [resolvable:$true] %s403
          %409 = dma.hbm_to_vmem [thread:$0]  %s402, 1024, %s404, [#allocation15], 128, 128, 8
        $region36: #{tpu_custom_call.1} parent=11 // pred_fallthru
          _
        // Predicated region
        $region37: #{tpu_custom_call.1} parent=11 // pred_check
          %p410 = pneg %p212
        $region38: #{tpu_custom_call.1} parent=11 // pred_check_branch
          %412 = sbr.rel (%p410) target = $region40
        $region39: #{tpu_custom_call.1} parent=11 // pred_region
          _
        $region40: #{tpu_custom_call.1} parent=11 // pred_fallthru
          _
        // Predicated region
        $region41: #{tpu_custom_call.1} parent=11 // pred_check
          %p413 = pneg %p233
        $region42: #{tpu_custom_call.1} parent=11 // pred_check_branch
          %415 = sbr.rel (%p413) target = $region44
        $region43: #{tpu_custom_call.1} parent=11 // pred_region
          _
        $region44: #{tpu_custom_call.1} parent=11 // pred_fallthru
          _
        // Predicated region
        $region45: #{tpu_custom_call.1} parent=11 // pred_check
          %p416 = pneg %p254
        $region46: #{tpu_custom_call.1} parent=11 // pred_check_branch
          %418 = sbr.rel (%p416) target = $region48
        $region47: #{tpu_custom_call.1} parent=11 // pred_region
          _
        $region48: #{tpu_custom_call.1} parent=11 // pred_fallthru
          _
        // Predicated region
        $region49: #{tpu_custom_call.1} parent=11 // pred_check
          %p419 = pneg %p275
        $region50: #{tpu_custom_call.1} parent=11 // pred_check_branch
          %421 = sbr.rel (%p419) target = $region52
        $region51: #{tpu_custom_call.1} parent=11 // pred_region
          %423 = vsyncadd [#allocation15], 0
          %s424 = sshll.u32 %s10, 4
          %s425 = int_to_ptr.hbm [resolvable:$true] %s424
          %s426 = sshll.u32 [#allocation16], 4
          %s427 = int_to_ptr.vmem [resolvable:$true] %s426
          %432 = dma.hbm_to_vmem [thread:$0]  %s425, 1024, %s427, [#allocation15], 128, 128, 8
        $region52: #{tpu_custom_call.1} parent=11 // pred_fallthru
          _
        // Predicated region
        $region53: #{tpu_custom_call.1} parent=11 // pred_check
          %p433 = pneg %p296
        $region54: #{tpu_custom_call.1} parent=11 // pred_check_branch
          %435 = sbr.rel (%p433) target = $region56
        $region55: #{tpu_custom_call.1} parent=11 // pred_region
          _
        $region56: #{tpu_custom_call.1} parent=11 // pred_fallthru
          _
      $region12: #{tpu_custom_call.1} parent=5 // pred_fallthru
        _
      %p436 = scmp.lt.s32.totalorder %s27, 4
      // Predicated region
      $region57: #{tpu_custom_call.1} parent=5 // pred_check
        %p437 = pneg %p436
      $region58: #{tpu_custom_call.1} parent=5 // pred_check_branch
        %439 = sbr.rel (%p437) target = $region60
      $region59: #{tpu_custom_call.1} parent=5 // pred_region
        // Predicated region
        $region61: #{tpu_custom_call.1} parent=59 // pred_check
          %p440 = pneg %p59
        $region62: #{tpu_custom_call.1} parent=59 // pred_check_branch
          %442 = sbr.rel (%p440) target = $region64
        $region63: #{tpu_custom_call.1} parent=59 // pred_region
          %s443 = sand.u32 %s49, 1
          %s444 = scalar_lea.sflag [#allocation6], %s443
          %s445 = sand.u32 %s49, 1
          %s446 = smul.addr %s445, 64
          %s447 = scalar_lea.vmem [#allocation5], %s446
          %449 = vsyncadd %s444, 0
          %s450 = smul.addr %s34, 8
          %s451 = smul.addr %s450, 8
          %s452 = scalar_lea.hbm %s0, %s451
          %s453 = sshll.u32 %s452, 4
          %s454 = int_to_ptr.hbm [resolvable:$true] %s453
          %s455 = sshll.u32 %s447, 4
          %s456 = int_to_ptr.vmem [resolvable:$true] %s455
          %461 = dma.hbm_to_vmem [thread:$0]  %s454, 1024, %s456, %s444, 128, 128, 8
        $region64: #{tpu_custom_call.1} parent=59 // pred_fallthru
          _
      $region60: #{tpu_custom_call.1} parent=5 // pred_fallthru
        _
      %p462 = scmp.le.s32.totalorder 1, %s27
      %p463 = scmp.lt.s32.totalorder %s27, 5
      %p464 = pnand %p462, %p463
      %p465 = pneg %p464
      // Predicated region
      $region65: #{tpu_custom_call.1} parent=5 // pred_check
        _
      $region66: #{tpu_custom_call.1} parent=5 // pred_check_branch
        %467 = sbr.rel (%p464) target = $region68
      $region67: #{tpu_custom_call.1} parent=5 // pred_region
        %s468 = ssub.s32 %s27, 1
        %s469 = sand.u32 %s52, 1
        %s470 = scalar_lea.sflag [#allocation6], %s469
        %s471 = sand.u32 %s52, 1
        %s472 = smul.addr %s471, 64
        %s473 = scalar_lea.vmem [#allocation5], %s472
        // Predicated region
        $region69: #{tpu_custom_call.1} parent=67 // pred_check
          %p474 = pneg %p65
        $region70: #{tpu_custom_call.1} parent=67 // pred_check_branch
          %476 = sbr.rel (%p474) target = $region72
        $region71: #{tpu_custom_call.1} parent=67 // pred_region
          %478 = dma.done %s470, 1024
        $region72: #{tpu_custom_call.1} parent=67 // pred_fallthru
          _
        // Predicated region
        $region73: #{tpu_custom_call.1} parent=67 // pred_check
          %p479 = pneg %p86
        $region74: #{tpu_custom_call.1} parent=67 // pred_check_branch
          %481 = sbr.rel (%p479) target = $region76
        $region75: #{tpu_custom_call.1} parent=67 // pred_region
          %483 = dma.done [#allocation9], 16
        $region76: #{tpu_custom_call.1} parent=67 // pred_fallthru
          _
        // Predicated region
        $region77: #{tpu_custom_call.1} parent=67 // pred_check
          %p484 = pneg %p128
        $region78: #{tpu_custom_call.1} parent=67 // pred_check_branch
          %486 = sbr.rel (%p484) target = $region80
        $region79: #{tpu_custom_call.1} parent=67 // pred_region
          %488 = dma.done [#allocation9], 512
        $region80: #{tpu_custom_call.1} parent=67 // pred_fallthru
          _
        // Predicated region
        $region81: #{tpu_custom_call.1} parent=67 // pred_check
          %p489 = pneg %p149
        $region82: #{tpu_custom_call.1} parent=67 // pred_check_branch
          %491 = sbr.rel (%p489) target = $region84
        $region83: #{tpu_custom_call.1} parent=67 // pred_region
          %493 = dma.done [#allocation12], 1024
        $region84: #{tpu_custom_call.1} parent=67 // pred_fallthru
          _
        // Predicated region
        $region85: #{tpu_custom_call.1} parent=67 // pred_check
          %p494 = pneg %p170
        $region86: #{tpu_custom_call.1} parent=67 // pred_check_branch
          %496 = sbr.rel (%p494) target = $region88
        $region87: #{tpu_custom_call.1} parent=67 // pred_region
          %498 = dma.done [#allocation12], 1024
        $region88: #{tpu_custom_call.1} parent=67 // pred_fallthru
          _
        // Predicated region
        $region89: #{tpu_custom_call.1} parent=67 // pred_check
          %p499 = pneg %p191
        $region90: #{tpu_custom_call.1} parent=67 // pred_check_branch
          %501 = sbr.rel (%p499) target = $region92
        $region91: #{tpu_custom_call.1} parent=67 // pred_region
          %503 = dma.done [#allocation15], 1024
        $region92: #{tpu_custom_call.1} parent=67 // pred_fallthru
          _
        // Predicated region
        $region93: #{tpu_custom_call.1} parent=67 // pred_check
          %p504 = pneg %p275
        $region94: #{tpu_custom_call.1} parent=67 // pred_check_branch
          %506 = sbr.rel (%p504) target = $region96
        $region95: #{tpu_custom_call.1} parent=67 // pred_region
          %508 = dma.done [#allocation15], 1024
        $region96: #{tpu_custom_call.1} parent=67 // pred_fallthru
          _
        %s509 = sand.u32 %s52, 1
        %s510 = scalar_lea.sflag [#allocation6], %s509
        %s511 = sand.u32 %s52, 1
        %s512 = smul.addr %s511, 64
        %s513 = scalar_lea.vmem [#allocation5], %s512
        %p514 = pneg %p65
        %p515 = pneg %p62
        %p516 = pneg %p86
        %p517 = pneg %p83
        %p518 = pneg %p107
        %p519 = pneg %p104
        %p520 = pneg %p128
        %p521 = pneg %p125
        %p522 = pneg %p149
        %p523 = pneg %p146
        %p524 = pneg %p170
        %p525 = pneg %p167
        %p526 = pneg %p191
        %p527 = pneg %p188
        %p528 = pneg %p212
        %p529 = pneg %p209
        %p530 = pneg %p233
        %p531 = pneg %p230
        %p532 = pneg %p254
        %p533 = pneg %p251
        %p534 = pneg %p275
        %p535 = pneg %p272
        %p536 = pneg %p296
        %p537 = pneg %p293
        %p538 = pneg %p324
        %p539 = pneg %p321
        %s540 = sand.u32 %s311, 1
        %s541 = scalar_lea.sflag [#allocation7], %s540
        %s542 = sand.u32 %s311, 1
        %s543 = smul.addr %s542, 32
        %s544 = scalar_lea.vmem [#allocation17], %s543
        %s545 = smul.u32 4, %s37
        %p546 = scmp.eq.s32.totalorder %s37, 0
        // Predicated region
        $region97: #{tpu_custom_call.1} parent=67 // pred_check
          %p547 = pneg %p546
        $region98: #{tpu_custom_call.1} parent=67 // pred_check_branch
          %549 = sbr.rel (%p547) target = $region100
        $region99: #{tpu_custom_call.1} parent=67 // pred_region
          %v550 = vld [vmem:[%s473] sm:$0xff]
          %v551 = vld [vmem:[%s473 + $0x8] sm:$0xff]
          %v552 = vld [vmem:[%s473 + $0x10] sm:$0xff]
          %v553 = vld [vmem:[%s473 + $0x18] sm:$0xff]
          %v554 = vld [vmem:[%s473 + $0x20] sm:$0xff]
          %v555 = vld [vmem:[%s473 + $0x28] sm:$0xff]
          %v556 = vld [vmem:[%s473 + $0x30] sm:$0xff]
          %v557 = vld [vmem:[%s473 + $0x38] sm:$0xff]
          %v558 = vld [vmem:[#allocation10] sm:$0xff]
          %v559 = vld [vmem:[#allocation10 + $0x8] sm:$0xff]
          %v560 = vld [vmem:[#allocation10 + $0x10] sm:$0xff]
          %v561 = vld [vmem:[#allocation10 + $0x18] sm:$0xff]
          %vm562 = vcmask 523264
          %v563 = vsel %vm562, %v550, 0.0
          %v564 = vsel %vm562, %v551, 0.0
          %v565 = vadd.f32 %v563, %v564
          %v566 = vsel %vm562, %v552, 0.0
          %v567 = vadd.f32 %v565, %v566
          %v568 = vsel %vm562, %v553, 0.0
          %v569 = vadd.f32 %v567, %v568
          %v570 = vsel %vm562, %v554, 0.0
          %v571 = vadd.f32 %v569, %v570
          %v572 = vsel %vm562, %v555, 0.0
          %v573 = vadd.f32 %v571, %v572
          %v574 = vsel %vm562, %v556, 0.0
          %v575 = vadd.f32 %v573, %v574
          %v576 = vsel %vm562, %v557, 0.0
          %v577 = vadd.f32 %v575, %v576
          %v578 = vrot.slane %v577, 4
          %v579 = vadd.f32 %v577, %v578
          %v580 = vrot.slane %v579, 2
          %v581 = vadd.f32 %v579, %v580
          %v582 = vrot.slane %v581, 1
          %v583 = vadd.f32 %v581, %v582
          %v585 = vsel %vm562, %v583, 0
          %v588 = vsel %vm562, %v558, 0
          %v591 = vsel %vm562, %v559, 0
          %v594 = vsel %vm562, %v560, 0
          %v597 = vsel %vm562, %v561, 0
          %599 = vmatpush.xpose.msra.mxu0 0.0
          %600 = vmatpush.xpose.msra.mxu0 0.0
          %601 = vmatpush.xpose.msra.mxu0 0.0
          %602 = vmatpush.xpose.msra.mxu0 0.0
          %603 = vmatpush.xpose.msra.mxu0 0.0
          %604 = vmatpush.xpose.msra.mxu0 0.0
          %605 = vmatpush.xpose.msra.mxu0 0.0
          %606 = vmatpush.xpose.msra.mxu0 0.0
          %607 = vmatpush.xpose.msra.mxu0 0.0
          %608 = vmatpush.xpose.msra.mxu0 0.0
          %609 = vmatpush.xpose.msra.mxu0 0.0
          %610 = vmatpush.xpose.msra.mxu0 0.0
          %611 = vmatpush.xpose.msra.mxu0 %v597
          %612 = vmatpush.xpose.msra.mxu0 %v594
          %613 = vmatpush.xpose.msra.mxu0 %v591
          %614 = vmatpush.xpose.msra.mxu0 %v588
          %615 = vmatmul.f32.gmra.mxu0 %v585
          %v616 = vpop.f32.mrf.mxu0
          %v617 = vadd.f32 0.0, %v616
          %618 = vdwg.mxu0
          %v619 = vrcp.pop 128.0
          %v620 = vmul.f32 128.0, %v619
          %v621 = vsub.f32 1.0, %v620
          %v622 = vmul.f32 %v619, %v621
          %v623 = vadd.f32 %v619, %v622
          %vm624 = vweird.f32 %v619
          %v625 = vsel %vm624, %v619, %v623
          %v626 = vmul.f32 %v617, %v625
          %vm627 = vcmask 261120
          %v629 = vsel %vm627, %v626, 0
          %631 = vmatpush.msra.mxu0 0.0
          %632 = vmatpush.msra.mxu0 0.0
          %633 = vmatpush.msra.mxu0 0.0
          %634 = vmatpush.msra.mxu0 0.0
          %635 = vmatpush.msra.mxu0 0.0
          %636 = vmatpush.msra.mxu0 0.0
          %637 = vmatpush.msra.mxu0 0.0
          %638 = vmatpush.msra.mxu0 0.0
          %639 = vmatpush.msra.mxu0 0.0
          %640 = vmatpush.msra.mxu0 0.0
          %641 = vmatpush.msra.mxu0 0.0
          %642 = vmatpush.msra.mxu0 0.0
          %643 = vmatpush.msra.mxu0 %v561
          %644 = vmatpush.msra.mxu0 %v560
          %645 = vmatpush.msra.mxu0 %v559
          %646 = vmatpush.msra.mxu0 %v558
          %647 = vmatmul.f32.gmra.mxu0 %v629
          %v648 = vpop.f32.mrf.mxu0
          %v649 = vadd.f32 0.0, %v648
          %650 = vdwg.mxu0
          %v651 = vperm.slane %v649, 0
          %v652 = vsub.f32 %v550, %v651
          %v653 = vsub.f32 %v551, %v651
          %v654 = vsub.f32 %v552, %v651
          %v655 = vsub.f32 %v553, %v651
          %v656 = vsub.f32 %v554, %v651
          %v657 = vsub.f32 %v555, %v651
          %v658 = vsub.f32 %v556, %v651
          %v659 = vsub.f32 %v557, %v651
          %v660 = vmul.f32 %v652, %v652
          %v661 = vmul.f32 %v653, %v653
          %v662 = vmul.f32 %v654, %v654
          %v663 = vmul.f32 %v655, %v655
          %v664 = vmul.f32 %v656, %v656
          %v665 = vmul.f32 %v657, %v657
          %v666 = vmul.f32 %v658, %v658
          %v667 = vmul.f32 %v659, %v659
          %v668 = vsel %vm562, %v660, 0.0
          %v669 = vsel %vm562, %v661, 0.0
          %v670 = vadd.f32 %v668, %v669
          %v671 = vsel %vm562, %v662, 0.0
          %v672 = vadd.f32 %v670, %v671
          %v673 = vsel %vm562, %v663, 0.0
          %v674 = vadd.f32 %v672, %v673
          %v675 = vsel %vm562, %v664, 0.0
          %v676 = vadd.f32 %v674, %v675
          %v677 = vsel %vm562, %v665, 0.0
          %v678 = vadd.f32 %v676, %v677
          %v679 = vsel %vm562, %v666, 0.0
          %v680 = vadd.f32 %v678, %v679
          %v681 = vsel %vm562, %v667, 0.0
          %v682 = vadd.f32 %v680, %v681
          %v683 = vrot.slane %v682, 4
          %v684 = vadd.f32 %v682, %v683
          %v685 = vrot.slane %v684, 2
          %v686 = vadd.f32 %v684, %v685
          %v687 = vrot.slane %v686, 1
          %v688 = vadd.f32 %v686, %v687
          %v690 = vsel %vm562, %v688, 0
          %692 = vmatpush.xpose.msra.mxu0 0.0
          %693 = vmatpush.xpose.msra.mxu0 0.0
          %694 = vmatpush.xpose.msra.mxu0 0.0
          %695 = vmatpush.xpose.msra.mxu0 0.0
          %696 = vmatpush.xpose.msra.mxu0 0.0
          %697 = vmatpush.xpose.msra.mxu0 0.0
          %698 = vmatpush.xpose.msra.mxu0 0.0
          %699 = vmatpush.xpose.msra.mxu0 0.0
          %700 = vmatpush.xpose.msra.mxu0 0.0
          %701 = vmatpush.xpose.msra.mxu0 0.0
          %702 = vmatpush.xpose.msra.mxu0 0.0
          %703 = vmatpush.xpose.msra.mxu0 0.0
          %704 = vmatpush.xpose.msra.mxu0 %v597
          %705 = vmatpush.xpose.msra.mxu0 %v594
          %706 = vmatpush.xpose.msra.mxu0 %v591
          %707 = vmatpush.xpose.msra.mxu0 %v588
          %708 = vmatmul.f32.gmra.mxu0 %v690
          %v709 = vpop.f32.mrf.mxu0
          %v710 = vadd.f32 0.0, %v709
          %711 = vdwg.mxu0
          %v712 = vmul.f32 %v710, %v625
          %v713 = vadd.f32 %v712, 1e-05
          %v714 = vrsqrt.pop %v713
          %v715 = vmul.f32 %v714, %v713
          %v716 = vmul.f32 %v715, %v714
          %v717 = vmul.f32 0.5, %v716
          %v718 = vsub.f32 1.5, %v717
          %v719 = vmul.f32 %v714, %v718
          %vm720 = vweird.f32 %v713
          %vm721 = vweird.f32 %v714
          %vm722 = vmor %vm720, %vm721
          %v723 = vsel %vm722, %v714, %v719
          %v725 = vsel %vm627, %v723, 0
          %727 = vmatpush.msra.mxu0 0.0
          %728 = vmatpush.msra.mxu0 0.0
          %729 = vmatpush.msra.mxu0 0.0
          %730 = vmatpush.msra.mxu0 0.0
          %731 = vmatpush.msra.mxu0 0.0
          %732 = vmatpush.msra.mxu0 0.0
          %733 = vmatpush.msra.mxu0 0.0
          %734 = vmatpush.msra.mxu0 0.0
          %735 = vmatpush.msra.mxu0 0.0
          %736 = vmatpush.msra.mxu0 0.0
          %737 = vmatpush.msra.mxu0 0.0
          %738 = vmatpush.msra.mxu0 0.0
          %739 = vmatpush.msra.mxu0 %v561
          %740 = vmatpush.msra.mxu0 %v560
          %741 = vmatpush.msra.mxu0 %v559
          %742 = vmatpush.msra.mxu0 %v558
          %743 = vmatmul.f32.gmra.mxu0 %v725
          %v744 = vpop.f32.mrf.mxu0
          %v745 = vadd.f32 0.0, %v744
          %746 = vdwg.mxu0
          %v747 = vperm.slane %v745, 0
          %v748 = vmul.f32 %v652, %v747
          %v749 = vmul.f32 %v653, %v747
          %v750 = vmul.f32 %v654, %v747
          %v751 = vmul.f32 %v655, %v747
          %v752 = vmul.f32 %v656, %v747
          %v753 = vmul.f32 %v657, %v747
          %v754 = vmul.f32 %v658, %v747
          %v755 = vmul.f32 %v659, %v747
          %v756 = vld [vmem:[#allocation8] sm:$0x1]
          %v758 = vperm.slane %v756, 0
          %v760 = vmul.f32 %v748, %v758
          %v761 = vmul.f32 %v749, %v758
          %v762 = vmul.f32 %v750, %v758
          %v763 = vmul.f32 %v751, %v758
          %v764 = vmul.f32 %v752, %v758
          %v765 = vmul.f32 %v753, %v758
          %v766 = vmul.f32 %v754, %v758
          %v767 = vmul.f32 %v755, %v758
          %v768 = vld [vmem:[%s2] sm:$0x1]
          %v770 = vperm.slane %v768, 0
          %v772 = vadd.f32 %v760, %v770
          %v773 = vadd.f32 %v761, %v770
          %v774 = vadd.f32 %v762, %v770
          %v775 = vadd.f32 %v763, %v770
          %v776 = vadd.f32 %v764, %v770
          %v777 = vadd.f32 %v765, %v770
          %v778 = vadd.f32 %v766, %v770
          %v779 = vadd.f32 %v767, %v770
          %780 = vst.msk [vmem:[#allocation2] sm:$0xff] %vm562, %v772
          %781 = vst.msk [vmem:[#allocation2 + $0x8] sm:$0xff] %vm562, %v773
          %782 = vst.msk [vmem:[#allocation2 + $0x10] sm:$0xff] %vm562, %v774
          %783 = vst.msk [vmem:[#allocation2 + $0x18] sm:$0xff] %vm562, %v775
          %784 = vst.msk [vmem:[#allocation2 + $0x20] sm:$0xff] %vm562, %v776
          %785 = vst.msk [vmem:[#allocation2 + $0x28] sm:$0xff] %vm562, %v777
          %786 = vst.msk [vmem:[#allocation2 + $0x30] sm:$0xff] %vm562, %v778
          %787 = vst.msk [vmem:[#allocation2 + $0x38] sm:$0xff] %vm562, %v779
          %v788 = vld [vmem:[#allocation13] sm:$0xff]
          %v789 = vld [vmem:[#allocation13 + $0x8] sm:$0xff]
          %v790 = vld [vmem:[#allocation13 + $0x10] sm:$0xff]
          %v791 = vld [vmem:[#allocation13 + $0x18] sm:$0xff]
          %v792 = vld [vmem:[#allocation13 + $0x20] sm:$0xff]
          %v793 = vld [vmem:[#allocation13 + $0x28] sm:$0xff]
          %v794 = vld [vmem:[#allocation13 + $0x30] sm:$0xff]
          %v795 = vld [vmem:[#allocation13 + $0x38] sm:$0xff]
          %v796 = vld [vmem:[%s8] sm:$0x1]
          %v798 = vperm.slane %v796, 0
          %v801 = vsel %vm562, %v772, 0
          %v804 = vsel %vm562, %v773, 0
          %v807 = vsel %vm562, %v774, 0
          %v810 = vsel %vm562, %v775, 0
          %v813 = vsel %vm562, %v776, 0
          %v816 = vsel %vm562, %v777, 0
          %v819 = vsel %vm562, %v778, 0
          %v822 = vsel %vm562, %v779, 0
          %824 = vmatpush.msra.mxu0 0.0
          %825 = vmatpush.msra.mxu0 0.0
          %826 = vmatpush.msra.mxu0 0.0
          %827 = vmatpush.msra.mxu0 0.0
          %828 = vmatpush.msra.mxu0 0.0
          %829 = vmatpush.msra.mxu0 0.0
          %830 = vmatpush.msra.mxu0 0.0
          %831 = vmatpush.msra.mxu0 0.0
          %832 = vmatpush.msra.mxu0 %v795
          %833 = vmatpush.msra.mxu0 %v794
          %834 = vmatpush.msra.mxu0 %v793
          %835 = vmatpush.msra.mxu0 %v792
          %836 = vmatpush.msra.mxu0 %v791
          %837 = vmatpush.msra.mxu0 %v790
          %838 = vmatpush.msra.mxu0 %v789
          %839 = vmatpush.msra.mxu0 %v788
          %840 = vmatmul.f32.gmra.mxu0 %v801
          %v841 = vpop.f32.mrf.mxu0
          %v842 = vadd.f32 %v798, %v841
          %843 = vmatmul.f32.gmra.mxu0 %v804
          %v844 = vpop.f32.mrf.mxu0
          %v845 = vadd.f32 %v798, %v844
          %846 = vmatmul.f32.gmra.mxu0 %v807
          %v847 = vpop.f32.mrf.mxu0
          %v848 = vadd.f32 %v798, %v847
          %849 = vmatmul.f32.gmra.mxu0 %v810
          %v850 = vpop.f32.mrf.mxu0
          %v851 = vadd.f32 %v798, %v850
          %852 = vmatmul.f32.gmra.mxu0 %v813
          %v853 = vpop.f32.mrf.mxu0
          %v854 = vadd.f32 %v798, %v853
          %855 = vmatmul.f32.gmra.mxu0 %v816
          %v856 = vpop.f32.mrf.mxu0
          %v857 = vadd.f32 %v798, %v856
          %858 = vmatmul.f32.gmra.mxu0 %v819
          %v859 = vpop.f32.mrf.mxu0
          %v860 = vadd.f32 %v798, %v859
          %861 = vmatmul.f32.gmra.mxu0 %v822
          %v862 = vpop.f32.mrf.mxu0
          %v863 = vadd.f32 %v798, %v862
          %864 = vdwg.mxu0
          %865 = vst.msk [vmem:[#allocation3] sm:$0xff] %vm562, %v842
          %866 = vst.msk [vmem:[#allocation3 + $0x8] sm:$0xff] %vm562, %v845
          %867 = vst.msk [vmem:[#allocation3 + $0x10] sm:$0xff] %vm562, %v848
          %868 = vst.msk [vmem:[#allocation3 + $0x18] sm:$0xff] %vm562, %v851
          %869 = vst.msk [vmem:[#allocation3 + $0x20] sm:$0xff] %vm562, %v854
          %870 = vst.msk [vmem:[#allocation3 + $0x28] sm:$0xff] %vm562, %v857
          %871 = vst.msk [vmem:[#allocation3 + $0x30] sm:$0xff] %vm562, %v860
          %872 = vst.msk [vmem:[#allocation3 + $0x38] sm:$0xff] %vm562, %v863
          %v873 = vld [vmem:[#allocation14] sm:$0xff]
          %v874 = vld [vmem:[#allocation14 + $0x8] sm:$0xff]
          %v875 = vld [vmem:[#allocation14 + $0x10] sm:$0xff]
          %v876 = vld [vmem:[#allocation14 + $0x18] sm:$0xff]
          %v877 = vld [vmem:[#allocation14 + $0x20] sm:$0xff]
          %v878 = vld [vmem:[#allocation14 + $0x28] sm:$0xff]
          %v879 = vld [vmem:[#allocation14 + $0x30] sm:$0xff]
          %v880 = vld [vmem:[#allocation14 + $0x38] sm:$0xff]
          %v881 = vld [vmem:[%s9] sm:$0x1]
          %v883 = vperm.slane %v881, 0
          %885 = vmatpush.msra.mxu0 0.0
          %886 = vmatpush.msra.mxu0 0.0
          %887 = vmatpush.msra.mxu0 0.0
          %888 = vmatpush.msra.mxu0 0.0
          %889 = vmatpush.msra.mxu0 0.0
          %890 = vmatpush.msra.mxu0 0.0
          %891 = vmatpush.msra.mxu0 0.0
          %892 = vmatpush.msra.mxu0 0.0
          %893 = vmatpush.msra.mxu0 %v880
          %894 = vmatpush.msra.mxu0 %v879
          %895 = vmatpush.msra.mxu0 %v878
          %896 = vmatpush.msra.mxu0 %v877
          %897 = vmatpush.msra.mxu0 %v876
          %898 = vmatpush.msra.mxu0 %v875
          %899 = vmatpush.msra.mxu0 %v874
          %900 = vmatpush.msra.mxu0 %v873
          %901 = vmatmul.f32.gmra.mxu0 %v801
          %v902 = vpop.f32.mrf.mxu0
          %v903 = vadd.f32 %v883, %v902
          %904 = vmatmul.f32.gmra.mxu0 %v804
          %v905 = vpop.f32.mrf.mxu0
          %v906 = vadd.f32 %v883, %v905
          %907 = vmatmul.f32.gmra.mxu0 %v807
          %v908 = vpop.f32.mrf.mxu0
          %v909 = vadd.f32 %v883, %v908
          %910 = vmatmul.f32.gmra.mxu0 %v810
          %v911 = vpop.f32.mrf.mxu0
          %v912 = vadd.f32 %v883, %v911
          %913 = vmatmul.f32.gmra.mxu0 %v813
          %v914 = vpop.f32.mrf.mxu0
          %v915 = vadd.f32 %v883, %v914
          %916 = vmatmul.f32.gmra.mxu0 %v816
          %v917 = vpop.f32.mrf.mxu0
          %v918 = vadd.f32 %v883, %v917
          %919 = vmatmul.f32.gmra.mxu0 %v819
          %v920 = vpop.f32.mrf.mxu0
          %v921 = vadd.f32 %v883, %v920
          %922 = vmatmul.f32.gmra.mxu0 %v822
          %v923 = vpop.f32.mrf.mxu0
          %v924 = vadd.f32 %v883, %v923
          %925 = vdwg.mxu0
          %926 = vst.msk [vmem:[#allocation4] sm:$0xff] %vm562, %v903
          %927 = vst.msk [vmem:[#allocation4 + $0x8] sm:$0xff] %vm562, %v906
          %928 = vst.msk [vmem:[#allocation4 + $0x10] sm:$0xff] %vm562, %v909
          %929 = vst.msk [vmem:[#allocation4 + $0x18] sm:$0xff] %vm562, %v912
          %930 = vst.msk [vmem:[#allocation4 + $0x20] sm:$0xff] %vm562, %v915
          %931 = vst.msk [vmem:[#allocation4 + $0x28] sm:$0xff] %vm562, %v918
          %932 = vst.msk [vmem:[#allocation4 + $0x30] sm:$0xff] %vm562, %v921
          %933 = vst.msk [vmem:[#allocation4 + $0x38] sm:$0xff] %vm562, %v924
        $region100: #{tpu_custom_call.1} parent=67 // pred_fallthru
          _
        %s934 = smul.u32 %s37, 32
        %s935 = scalar_lea.vmem [#allocation2], %s934
        %v936 = vld [vmem:[%s935] sm:$0xff]
        %v937 = vld [vmem:[%s935 + $0x8] sm:$0xff]
        %v938 = vld [vmem:[%s935 + $0x10] sm:$0xff]
        %v939 = vld [vmem:[%s935 + $0x18] sm:$0xff]
        %v940 = vld [vmem:[#allocation11] sm:$0xff]
        %v941 = vld [vmem:[#allocation11 + $0x8] sm:$0xff]
        %v942 = vld [vmem:[#allocation11 + $0x10] sm:$0xff]
        %v943 = vld [vmem:[#allocation11 + $0x18] sm:$0xff]
        %v944 = vld [vmem:[#allocation11 + $0x20] sm:$0xff]
        %v945 = vld [vmem:[#allocation11 + $0x28] sm:$0xff]
        %v946 = vld [vmem:[#allocation11 + $0x30] sm:$0xff]
        %v947 = vld [vmem:[#allocation11 + $0x38] sm:$0xff]
        %v948 = vld [vmem:[%s7] sm:$0x1]
        %v950 = vperm.slane %v948, 0
        %vm952 = vcmask 523264
        %v954 = vsel %vm952, %v936, 0
        %v957 = vsel %vm952, %v937, 0
        %v960 = vsel %vm952, %v938, 0
        %v963 = vsel %vm952, %v939, 0
        %965 = vmatpush.msra.mxu0 0.0
        %966 = vmatpush.msra.mxu0 0.0
        %967 = vmatpush.msra.mxu0 0.0
        %968 = vmatpush.msra.mxu0 0.0
        %969 = vmatpush.msra.mxu0 0.0
        %970 = vmatpush.msra.mxu0 0.0
        %971 = vmatpush.msra.mxu0 0.0
        %972 = vmatpush.msra.mxu0 0.0
        %973 = vmatpush.msra.mxu0 %v947
        %974 = vmatpush.msra.mxu0 %v946
        %975 = vmatpush.msra.mxu0 %v945
        %976 = vmatpush.msra.mxu0 %v944
        %977 = vmatpush.msra.mxu0 %v943
        %978 = vmatpush.msra.mxu0 %v942
        %979 = vmatpush.msra.mxu0 %v941
        %980 = vmatpush.msra.mxu0 %v940
        %981 = vmatmul.f32.gmra.mxu0 %v954
        %v982 = vpop.f32.mrf.mxu0
        %v983 = vadd.f32 %v950, %v982
        %984 = vmatmul.f32.gmra.mxu0 %v957
        %v985 = vpop.f32.mrf.mxu0
        %v986 = vadd.f32 %v950, %v985
        %987 = vmatmul.f32.gmra.mxu0 %v960
        %v988 = vpop.f32.mrf.mxu0
        %v989 = vadd.f32 %v950, %v988
        %990 = vmatmul.f32.gmra.mxu0 %v963
        %v991 = vpop.f32.mrf.mxu0
        %v992 = vadd.f32 %v950, %v991
        %993 = vdwg.mxu0
        %v994 = vld [vmem:[#allocation3] sm:$0xff]
        %v995 = vld [vmem:[#allocation3 + $0x8] sm:$0xff]
        %v996 = vld [vmem:[#allocation3 + $0x10] sm:$0xff]
        %v997 = vld [vmem:[#allocation3 + $0x18] sm:$0xff]
        %v998 = vld [vmem:[#allocation3 + $0x20] sm:$0xff]
        %v999 = vld [vmem:[#allocation3 + $0x28] sm:$0xff]
        %v1000 = vld [vmem:[#allocation3 + $0x30] sm:$0xff]
        %v1001 = vld [vmem:[#allocation3 + $0x38] sm:$0xff]
        %v1002 = vld [vmem:[#allocation4] sm:$0xff]
        %v1003 = vld [vmem:[#allocation4 + $0x8] sm:$0xff]
        %v1004 = vld [vmem:[#allocation4 + $0x10] sm:$0xff]
        %v1005 = vld [vmem:[#allocation4 + $0x18] sm:$0xff]
        %v1006 = vld [vmem:[#allocation4 + $0x20] sm:$0xff]
        %v1007 = vld [vmem:[#allocation4 + $0x28] sm:$0xff]
        %v1008 = vld [vmem:[#allocation4 + $0x30] sm:$0xff]
        %v1009 = vld [vmem:[#allocation4 + $0x38] sm:$0xff]
        %vm1010 = vcmask 261120
        %v1012 = vsel %vm1010, %v983, 0
        %v1015 = vsel %vm1010, %v986, 0
        %v1018 = vsel %vm1010, %v989, 0
        %v1021 = vsel %vm1010, %v992, 0
        %v1024 = vsel %vm1010, %v994, 0
        %v1027 = vsel %vm1010, %v995, 0
        %v1030 = vsel %vm1010, %v996, 0
        %v1033 = vsel %vm1010, %v997, 0
        %v1036 = vsel %vm1010, %v998, 0
        %v1039 = vsel %vm1010, %v999, 0
        %v1042 = vsel %vm1010, %v1000, 0
        %v1045 = vsel %vm1010, %v1001, 0
        %1047 = vmatpush.xpose.msra.mxu0 0.0
        %1048 = vmatpush.xpose.msra.mxu0 0.0
        %1049 = vmatpush.xpose.msra.mxu0 0.0
        %1050 = vmatpush.xpose.msra.mxu0 0.0
        %1051 = vmatpush.xpose.msra.mxu0 0.0
        %1052 = vmatpush.xpose.msra.mxu0 0.0
        %1053 = vmatpush.xpose.msra.mxu0 0.0
        %1054 = vmatpush.xpose.msra.mxu0 0.0
        %1055 = vmatpush.xpose.msra.mxu0 %v1045
        %1056 = vmatpush.xpose.msra.mxu0 %v1042
        %1057 = vmatpush.xpose.msra.mxu0 %v1039
        %1058 = vmatpush.xpose.msra.mxu0 %v1036
        %1059 = vmatpush.xpose.msra.mxu0 %v1033
        %1060 = vmatpush.xpose.msra.mxu0 %v1030
        %1061 = vmatpush.xpose.msra.mxu0 %v1027
        %1062 = vmatpush.xpose.msra.mxu0 %v1024
        %1063 = vmatmul.f32.gmra.mxu0 %v1012
        %v1064 = vpop.f32.mrf.mxu0
        %v1065 = vadd.f32 0.0, %v1064
        %1066 = vmatmul.f32.gmra.mxu0 %v1015
        %v1067 = vpop.f32.mrf.mxu0
        %v1068 = vadd.f32 0.0, %v1067
        %1069 = vmatmul.f32.gmra.mxu0 %v1018
        %v1070 = vpop.f32.mrf.mxu0
        %v1071 = vadd.f32 0.0, %v1070
        %1072 = vmatmul.f32.gmra.mxu0 %v1021
        %v1073 = vpop.f32.mrf.mxu0
        %v1074 = vadd.f32 0.0, %v1073
        %1075 = vdwg.mxu0
        %v1076 = vsel %vm952, %v1065, -inf
        %1077 = vmax.xlane.f32.xlu0 %v1076
        %v1078 = vpop.xlane.xlu0 %1077
        %v1079 = vsel %vm952, %v1068, -inf
        %1080 = vmax.xlane.f32.xlu0 %v1079
        %v1081 = vpop.xlane.xlu0 %1080
        %v1082 = vsel %vm952, %v1071, -inf
        %1083 = vmax.xlane.f32.xlu0 %v1082
        %v1084 = vpop.xlane.xlu0 %1083
        %v1085 = vsel %vm952, %v1074, -inf
        %1086 = vmax.xlane.f32.xlu0 %v1085
        %v1087 = vpop.xlane.xlu0 %1086
        %v1088 = vsub.f32 %v1065, %v1078
        %v1089 = vsub.f32 %v1068, %v1081
        %v1090 = vsub.f32 %v1071, %v1084
        %v1091 = vsub.f32 %v1074, %v1087
        %v1092 = vmul.f32 %v1088, 1.442695
        %v1093 = vpow.pop %v1092
        %v1094 = vmul.f32 %v1089, 1.442695
        %v1095 = vpow.pop %v1094
        %v1096 = vmul.f32 %v1090, 1.442695
        %v1097 = vpow.pop %v1096
        %v1098 = vmul.f32 %v1091, 1.442695
        %v1099 = vpow.pop %v1098
        %v1100 = vsel %vm952, %v1093, 0.0
        %1101 = vadd.xlane.f32.xlu0 %v1100
        %v1102 = vpop.xlane.xlu0 %1101
        %v1103 = vsel %vm952, %v1095, 0.0
        %1104 = vadd.xlane.f32.xlu0 %v1103
        %v1105 = vpop.xlane.xlu0 %1104
        %v1106 = vsel %vm952, %v1097, 0.0
        %1107 = vadd.xlane.f32.xlu0 %v1106
        %v1108 = vpop.xlane.xlu0 %1107
        %v1109 = vsel %vm952, %v1099, 0.0
        %1110 = vadd.xlane.f32.xlu0 %v1109
        %v1111 = vpop.xlane.xlu0 %1110
        %v1113 = vsel %vm952, %v1093, 0
        %v1116 = vsel %vm952, %v1095, 0
        %v1119 = vsel %vm952, %v1097, 0
        %v1122 = vsel %vm952, %v1099, 0
        %1124 = vmatpush.msra.mxu0 0.0
        %1125 = vmatpush.msra.mxu0 0.0
        %1126 = vmatpush.msra.mxu0 0.0
        %1127 = vmatpush.msra.mxu0 0.0
        %1128 = vmatpush.msra.mxu0 0.0
        %1129 = vmatpush.msra.mxu0 0.0
        %1130 = vmatpush.msra.mxu0 0.0
        %1131 = vmatpush.msra.mxu0 0.0
        %1132 = vmatpush.msra.mxu0 %v1009
        %1133 = vmatpush.msra.mxu0 %v1008
        %1134 = vmatpush.msra.mxu0 %v1007
        %1135 = vmatpush.msra.mxu0 %v1006
        %1136 = vmatpush.msra.mxu0 %v1005
        %1137 = vmatpush.msra.mxu0 %v1004
        %1138 = vmatpush.msra.mxu0 %v1003
        %1139 = vmatpush.msra.mxu0 %v1002
        %1140 = vmatmul.f32.gmra.mxu0 %v1113
        %v1141 = vpop.f32.mrf.mxu0
        %v1142 = vadd.f32 0.0, %v1141
        %1143 = vmatmul.f32.gmra.mxu0 %v1116
        %v1144 = vpop.f32.mrf.mxu0
        %v1145 = vadd.f32 0.0, %v1144
        %1146 = vmatmul.f32.gmra.mxu0 %v1119
        %v1147 = vpop.f32.mrf.mxu0
        %v1148 = vadd.f32 0.0, %v1147
        %1149 = vmatmul.f32.gmra.mxu0 %v1122
        %v1150 = vpop.f32.mrf.mxu0
        %v1151 = vadd.f32 0.0, %v1150
        %1152 = vdwg.mxu0
        %v1153 = vrcp.pop %v1102
        %v1154 = vmul.f32 %v1102, %v1153
        %v1155 = vsub.f32 1.0, %v1154
        %v1156 = vmul.f32 %v1153, %v1155
        %v1157 = vadd.f32 %v1153, %v1156
        %vm1158 = vweird.f32 %v1102
        %vm1159 = vweird.f32 %v1153
        %vm1160 = vmor %vm1158, %vm1159
        %v1161 = vsel %vm1160, %v1153, %v1157
        %v1162 = vand.u32 2147483647, %v1102
        %vm1163 = vcmp.eq.f32.partialorder %v1162, 8.507059e+37
        %v1164 = vand.u32 %v1102, 2147483648
        %v1165 = vor.u32 1.1754944e-38, %v1164
        %v1166 = vsel %vm1163, %v1165, %v1161
        %v1167 = vmul.f32 1.0, %v1166
        %v1168 = vrcp.pop %v1105
        %v1169 = vmul.f32 %v1105, %v1168
        %v1170 = vsub.f32 1.0, %v1169
        %v1171 = vmul.f32 %v1168, %v1170
        %v1172 = vadd.f32 %v1168, %v1171
        %vm1173 = vweird.f32 %v1105
        %vm1174 = vweird.f32 %v1168
        %vm1175 = vmor %vm1173, %vm1174
        %v1176 = vsel %vm1175, %v1168, %v1172
        %v1177 = vand.u32 2147483647, %v1105
        %vm1178 = vcmp.eq.f32.partialorder %v1177, 8.507059e+37
        %v1179 = vand.u32 %v1105, 2147483648
        %v1180 = vor.u32 1.1754944e-38, %v1179
        %v1181 = vsel %vm1178, %v1180, %v1176
        %v1182 = vmul.f32 1.0, %v1181
        %v1183 = vrcp.pop %v1108
        %v1184 = vmul.f32 %v1108, %v1183
        %v1185 = vsub.f32 1.0, %v1184
        %v1186 = vmul.f32 %v1183, %v1185
        %v1187 = vadd.f32 %v1183, %v1186
        %vm1188 = vweird.f32 %v1108
        %vm1189 = vweird.f32 %v1183
        %vm1190 = vmor %vm1188, %vm1189
        %v1191 = vsel %vm1190, %v1183, %v1187
        %v1192 = vand.u32 2147483647, %v1108
        %vm1193 = vcmp.eq.f32.partialorder %v1192, 8.507059e+37
        %v1194 = vand.u32 %v1108, 2147483648
        %v1195 = vor.u32 1.1754944e-38, %v1194
        %v1196 = vsel %vm1193, %v1195, %v1191
        %v1197 = vmul.f32 1.0, %v1196
        %v1198 = vrcp.pop %v1111
        %v1199 = vmul.f32 %v1111, %v1198
        %v1200 = vsub.f32 1.0, %v1199
        %v1201 = vmul.f32 %v1198, %v1200
        %v1202 = vadd.f32 %v1198, %v1201
        %vm1203 = vweird.f32 %v1111
        %vm1204 = vweird.f32 %v1198
        %vm1205 = vmor %vm1203, %vm1204
        %v1206 = vsel %vm1205, %v1198, %v1202
        %v1207 = vand.u32 2147483647, %v1111
        %vm1208 = vcmp.eq.f32.partialorder %v1207, 8.507059e+37
        %v1209 = vand.u32 %v1111, 2147483648
        %v1210 = vor.u32 1.1754944e-38, %v1209
        %v1211 = vsel %vm1208, %v1210, %v1206
        %v1212 = vmul.f32 1.0, %v1211
        %v1213 = vmul.f32 %v1142, %v1167
        %v1214 = vmul.f32 %v1145, %v1182
        %v1215 = vmul.f32 %v1148, %v1197
        %v1216 = vmul.f32 %v1151, %v1212
        %1217 = vrot.lane.b32.xlu0 %v983, 96
        %v1218 = vpop.permute.xlu0 %1217
        %1219 = vrot.lane.b32.xlu0 %v986, 96
        %v1220 = vpop.permute.xlu0 %1219
        %1221 = vrot.lane.b32.xlu0 %v989, 96
        %v1222 = vpop.permute.xlu0 %1221
        %1223 = vrot.lane.b32.xlu0 %v992, 96
        %v1224 = vpop.permute.xlu0 %1223
        %1225 = vrot.lane.b32.xlu0 %v994, 96
        %v1226 = vpop.permute.xlu0 %1225
        %1227 = vrot.lane.b32.xlu0 %v995, 96
        %v1228 = vpop.permute.xlu0 %1227
        %1229 = vrot.lane.b32.xlu0 %v996, 96
        %v1230 = vpop.permute.xlu0 %1229
        %1231 = vrot.lane.b32.xlu0 %v997, 96
        %v1232 = vpop.permute.xlu0 %1231
        %1233 = vrot.lane.b32.xlu0 %v998, 96
        %v1234 = vpop.permute.xlu0 %1233
        %1235 = vrot.lane.b32.xlu0 %v999, 96
        %v1236 = vpop.permute.xlu0 %1235
        %1237 = vrot.lane.b32.xlu0 %v1000, 96
        %v1238 = vpop.permute.xlu0 %1237
        %1239 = vrot.lane.b32.xlu0 %v1001, 96
        %v1240 = vpop.permute.xlu0 %1239
        %v1241 = vsel %vm1010, %v1218, 0
        %v1243 = vsel %vm1010, %v1220, 0
        %v1245 = vsel %vm1010, %v1222, 0
        %v1247 = vsel %vm1010, %v1224, 0
        %v1249 = vsel %vm1010, %v1226, 0
        %v1251 = vsel %vm1010, %v1228, 0
        %v1253 = vsel %vm1010, %v1230, 0
        %v1255 = vsel %vm1010, %v1232, 0
        %v1257 = vsel %vm1010, %v1234, 0
        %v1259 = vsel %vm1010, %v1236, 0
        %v1261 = vsel %vm1010, %v1238, 0
        %v1263 = vsel %vm1010, %v1240, 0
        %1265 = vmatpush.xpose.msra.mxu0 0.0
        %1266 = vmatpush.xpose.msra.mxu0 0.0
        %1267 = vmatpush.xpose.msra.mxu0 0.0
        %1268 = vmatpush.xpose.msra.mxu0 0.0
        %1269 = vmatpush.xpose.msra.mxu0 0.0
        %1270 = vmatpush.xpose.msra.mxu0 0.0
        %1271 = vmatpush.xpose.msra.mxu0 0.0
        %1272 = vmatpush.xpose.msra.mxu0 0.0
        %1273 = vmatpush.xpose.msra.mxu0 %v1263
        %1274 = vmatpush.xpose.msra.mxu0 %v1261
        %1275 = vmatpush.xpose.msra.mxu0 %v1259
        %1276 = vmatpush.xpose.msra.mxu0 %v1257
        %1277 = vmatpush.xpose.msra.mxu0 %v1255
        %1278 = vmatpush.xpose.msra.mxu0 %v1253
        %1279 = vmatpush.xpose.msra.mxu0 %v1251
        %1280 = vmatpush.xpose.msra.mxu0 %v1249
        %1281 = vmatmul.f32.gmra.mxu0 %v1241
        %v1282 = vpop.f32.mrf.mxu0
        %v1283 = vadd.f32 0.0, %v1282
        %1284 = vmatmul.f32.gmra.mxu0 %v1243
        %v1285 = vpop.f32.mrf.mxu0
        %v1286 = vadd.f32 0.0, %v1285
        %1287 = vmatmul.f32.gmra.mxu0 %v1245
        %v1288 = vpop.f32.mrf.mxu0
        %v1289 = vadd.f32 0.0, %v1288
        %1290 = vmatmul.f32.gmra.mxu0 %v1247
        %v1291 = vpop.f32.mrf.mxu0
        %v1292 = vadd.f32 0.0, %v1291
        %1293 = vdwg.mxu0
        %v1294 = vsel %vm952, %v1283, -inf
        %1295 = vmax.xlane.f32.xlu0 %v1294
        %v1296 = vpop.xlane.xlu0 %1295
        %v1297 = vsel %vm952, %v1286, -inf
        %1298 = vmax.xlane.f32.xlu0 %v1297
        %v1299 = vpop.xlane.xlu0 %1298
        %v1300 = vsel %vm952, %v1289, -inf
        %1301 = vmax.xlane.f32.xlu0 %v1300
        %v1302 = vpop.xlane.xlu0 %1301
        %v1303 = vsel %vm952, %v1292, -inf
        %1304 = vmax.xlane.f32.xlu0 %v1303
        %v1305 = vpop.xlane.xlu0 %1304
        %v1306 = vsub.f32 %v1283, %v1296
        %v1307 = vsub.f32 %v1286, %v1299
        %v1308 = vsub.f32 %v1289, %v1302
        %v1309 = vsub.f32 %v1292, %v1305
        %v1310 = vmul.f32 %v1306, 1.442695
        %v1311 = vpow.pop %v1310
        %v1312 = vmul.f32 %v1307, 1.442695
        %v1313 = vpow.pop %v1312
        %v1314 = vmul.f32 %v1308, 1.442695
        %v1315 = vpow.pop %v1314
        %v1316 = vmul.f32 %v1309, 1.442695
        %v1317 = vpow.pop %v1316
        %v1318 = vsel %vm952, %v1311, 0.0
        %1319 = vadd.xlane.f32.xlu0 %v1318
        %v1320 = vpop.xlane.xlu0 %1319
        %v1321 = vsel %vm952, %v1313, 0.0
        %1322 = vadd.xlane.f32.xlu0 %v1321
        %v1323 = vpop.xlane.xlu0 %1322
        %v1324 = vsel %vm952, %v1315, 0.0
        %1325 = vadd.xlane.f32.xlu0 %v1324
        %v1326 = vpop.xlane.xlu0 %1325
        %v1327 = vsel %vm952, %v1317, 0.0
        %1328 = vadd.xlane.f32.xlu0 %v1327
        %v1329 = vpop.xlane.xlu0 %1328
        %1338 = vrot.lane.b32.xlu0 %v1002, 96
        %v1339 = vpop.permute.xlu0 %1338
        %1340 = vrot.lane.b32.xlu0 %v1003, 96
        %v1341 = vpop.permute.xlu0 %1340
        %1342 = vrot.lane.b32.xlu0 %v1004, 96
        %v1343 = vpop.permute.xlu0 %1342
        %1344 = vrot.lane.b32.xlu0 %v1005, 96
        %v1345 = vpop.permute.xlu0 %1344
        %1346 = vrot.lane.b32.xlu0 %v1006, 96
        %v1347 = vpop.permute.xlu0 %1346
        %1348 = vrot.lane.b32.xlu0 %v1007, 96
        %v1349 = vpop.permute.xlu0 %1348
        %1350 = vrot.lane.b32.xlu0 %v1008, 96
        %v1351 = vpop.permute.xlu0 %1350
        %1352 = vrot.lane.b32.xlu0 %v1009, 96
        %v1353 = vpop.permute.xlu0 %1352
        %v1363 = vsel %vm952, %v1311, 0
        %v1366 = vsel %vm952, %v1313, 0
        %v1369 = vsel %vm952, %v1315, 0
        %v1372 = vsel %vm952, %v1317, 0
        %1374 = vmatpush.msra.mxu0 0.0
        %1375 = vmatpush.msra.mxu0 0.0
        %1376 = vmatpush.msra.mxu0 0.0
        %1377 = vmatpush.msra.mxu0 0.0
        %1378 = vmatpush.msra.mxu0 0.0
        %1379 = vmatpush.msra.mxu0 0.0
        %1380 = vmatpush.msra.mxu0 0.0
        %1381 = vmatpush.msra.mxu0 0.0
        %1382 = vmatpush.msra.mxu0 %v1353
        %1383 = vmatpush.msra.mxu0 %v1351
        %1384 = vmatpush.msra.mxu0 %v1349
        %1385 = vmatpush.msra.mxu0 %v1347
        %1386 = vmatpush.msra.mxu0 %v1345
        %1387 = vmatpush.msra.mxu0 %v1343
        %1388 = vmatpush.msra.mxu0 %v1341
        %1389 = vmatpush.msra.mxu0 %v1339
        %1390 = vmatmul.f32.gmra.mxu0 %v1363
        %v1391 = vpop.f32.mrf.mxu0
        %v1392 = vadd.f32 0.0, %v1391
        %1393 = vmatmul.f32.gmra.mxu0 %v1366
        %v1394 = vpop.f32.mrf.mxu0
        %v1395 = vadd.f32 0.0, %v1394
        %1396 = vmatmul.f32.gmra.mxu0 %v1369
        %v1397 = vpop.f32.mrf.mxu0
        %v1398 = vadd.f32 0.0, %v1397
        %1399 = vmatmul.f32.gmra.mxu0 %v1372
        %v1400 = vpop.f32.mrf.mxu0
        %v1401 = vadd.f32 0.0, %v1400
        %1402 = vdwg.mxu0
        %v1403 = vrcp.pop %v1320
        %v1404 = vmul.f32 %v1320, %v1403
        %v1405 = vsub.f32 1.0, %v1404
        %v1406 = vmul.f32 %v1403, %v1405
        %v1407 = vadd.f32 %v1403, %v1406
        %vm1408 = vweird.f32 %v1320
        %vm1409 = vweird.f32 %v1403
        %vm1410 = vmor %vm1408, %vm1409
        %v1411 = vsel %vm1410, %v1403, %v1407
        %v1412 = vand.u32 2147483647, %v1320
        %vm1413 = vcmp.eq.f32.partialorder %v1412, 8.507059e+37
        %v1414 = vand.u32 %v1320, 2147483648
        %v1415 = vor.u32 1.1754944e-38, %v1414
        %v1416 = vsel %vm1413, %v1415, %v1411
        %v1417 = vmul.f32 1.0, %v1416
        %v1418 = vrcp.pop %v1323
        %v1419 = vmul.f32 %v1323, %v1418
        %v1420 = vsub.f32 1.0, %v1419
        %v1421 = vmul.f32 %v1418, %v1420
        %v1422 = vadd.f32 %v1418, %v1421
        %vm1423 = vweird.f32 %v1323
        %vm1424 = vweird.f32 %v1418
        %vm1425 = vmor %vm1423, %vm1424
        %v1426 = vsel %vm1425, %v1418, %v1422
        %v1427 = vand.u32 2147483647, %v1323
        %vm1428 = vcmp.eq.f32.partialorder %v1427, 8.507059e+37
        %v1429 = vand.u32 %v1323, 2147483648
        %v1430 = vor.u32 1.1754944e-38, %v1429
        %v1431 = vsel %vm1428, %v1430, %v1426
        %v1432 = vmul.f32 1.0, %v1431
        %v1433 = vrcp.pop %v1326
        %v1434 = vmul.f32 %v1326, %v1433
        %v1435 = vsub.f32 1.0, %v1434
        %v1436 = vmul.f32 %v1433, %v1435
        %v1437 = vadd.f32 %v1433, %v1436
        %vm1438 = vweird.f32 %v1326
        %vm1439 = vweird.f32 %v1433
        %vm1440 = vmor %vm1438, %vm1439
        %v1441 = vsel %vm1440, %v1433, %v1437
        %v1442 = vand.u32 2147483647, %v1326
        %vm1443 = vcmp.eq.f32.partialorder %v1442, 8.507059e+37
        %v1444 = vand.u32 %v1326, 2147483648
        %v1445 = vor.u32 1.1754944e-38, %v1444
        %v1446 = vsel %vm1443, %v1445, %v1441
        %v1447 = vmul.f32 1.0, %v1446
        %v1448 = vrcp.pop %v1329
        %v1449 = vmul.f32 %v1329, %v1448
        %v1450 = vsub.f32 1.0, %v1449
        %v1451 = vmul.f32 %v1448, %v1450
        %v1452 = vadd.f32 %v1448, %v1451
        %vm1453 = vweird.f32 %v1329
        %vm1454 = vweird.f32 %v1448
        %vm1455 = vmor %vm1453, %vm1454
        %v1456 = vsel %vm1455, %v1448, %v1452
        %v1457 = vand.u32 2147483647, %v1329
        %vm1458 = vcmp.eq.f32.partialorder %v1457, 8.507059e+37
        %v1459 = vand.u32 %v1329, 2147483648
        %v1460 = vor.u32 1.1754944e-38, %v1459
        %v1461 = vsel %vm1458, %v1460, %v1456
        %v1462 = vmul.f32 1.0, %v1461
        %v1463 = vmul.f32 %v1392, %v1417
        %v1464 = vmul.f32 %v1395, %v1432
        %v1465 = vmul.f32 %v1398, %v1447
        %v1466 = vmul.f32 %v1401, %v1462
        %1471 = vrot.lane.b32.xlu0 %v1463, 32
        %v1472 = vpop.permute.xlu0 %1471
        %1473 = vrot.lane.b32.xlu0 %v1464, 32
        %v1474 = vpop.permute.xlu0 %1473
        %1475 = vrot.lane.b32.xlu0 %v1465, 32
        %v1476 = vpop.permute.xlu0 %1475
        %1477 = vrot.lane.b32.xlu0 %v1466, 32
        %v1478 = vpop.permute.xlu0 %1477
        %v1483 = vsel %vm1010, %v1213, %v1472
        %v1484 = vsel %vm1010, %v1214, %v1474
        %v1485 = vsel %vm1010, %v1215, %v1476
        %v1486 = vsel %vm1010, %v1216, %v1478
        %s1487 = scalar_lea.vmem %s473, %s934 [#allocation5]
        %v1488 = vld [vmem:[%s1487] sm:$0xff]
        %v1489 = vld [vmem:[%s1487 + $0x8] sm:$0xff]
        %v1490 = vld [vmem:[%s1487 + $0x10] sm:$0xff]
        %v1491 = vld [vmem:[%s1487 + $0x18] sm:$0xff]
        %v1492 = vld [vmem:[%s11] sm:$0x1]
        %v1494 = vperm.slane %v1492, 0
        %v1496 = vadd.f32 %v1488, %v1494
        %v1497 = vadd.f32 %v1489, %v1494
        %v1498 = vadd.f32 %v1490, %v1494
        %v1499 = vadd.f32 %v1491, %v1494
        %v1500 = vld [vmem:[#allocation16] sm:$0xff]
        %v1501 = vld [vmem:[#allocation16 + $0x8] sm:$0xff]
        %v1502 = vld [vmem:[#allocation16 + $0x10] sm:$0xff]
        %v1503 = vld [vmem:[#allocation16 + $0x18] sm:$0xff]
        %v1504 = vld [vmem:[#allocation16 + $0x20] sm:$0xff]
        %v1505 = vld [vmem:[#allocation16 + $0x28] sm:$0xff]
        %v1506 = vld [vmem:[#allocation16 + $0x30] sm:$0xff]
        %v1507 = vld [vmem:[#allocation16 + $0x38] sm:$0xff]
        %v1509 = vsel %vm952, %v1483, 0
        %v1512 = vsel %vm952, %v1484, 0
        %v1515 = vsel %vm952, %v1485, 0
        %v1518 = vsel %vm952, %v1486, 0
        %1520 = vmatpush.msra.mxu0 0.0
        %1521 = vmatpush.msra.mxu0 0.0
        %1522 = vmatpush.msra.mxu0 0.0
        %1523 = vmatpush.msra.mxu0 0.0
        %1524 = vmatpush.msra.mxu0 0.0
        %1525 = vmatpush.msra.mxu0 0.0
        %1526 = vmatpush.msra.mxu0 0.0
        %1527 = vmatpush.msra.mxu0 0.0
        %1528 = vmatpush.msra.mxu0 %v1507
        %1529 = vmatpush.msra.mxu0 %v1506
        %1530 = vmatpush.msra.mxu0 %v1505
        %1531 = vmatpush.msra.mxu0 %v1504
        %1532 = vmatpush.msra.mxu0 %v1503
        %1533 = vmatpush.msra.mxu0 %v1502
        %1534 = vmatpush.msra.mxu0 %v1501
        %1535 = vmatpush.msra.mxu0 %v1500
        %1536 = vmatmul.f32.gmra.mxu0 %v1509
        %v1537 = vpop.f32.mrf.mxu0
        %v1538 = vadd.f32 0.0, %v1537
        %1539 = vmatmul.f32.gmra.mxu0 %v1512
        %v1540 = vpop.f32.mrf.mxu0
        %v1541 = vadd.f32 0.0, %v1540
        %1542 = vmatmul.f32.gmra.mxu0 %v1515
        %v1543 = vpop.f32.mrf.mxu0
        %v1544 = vadd.f32 0.0, %v1543
        %1545 = vmatmul.f32.gmra.mxu0 %v1518
        %v1546 = vpop.f32.mrf.mxu0
        %v1547 = vadd.f32 0.0, %v1546
        %1548 = vdwg.mxu0
        %v1549 = vadd.f32 %v1496, %v1538
        %v1550 = vadd.f32 %v1497, %v1541
        %v1551 = vadd.f32 %v1498, %v1544
        %v1552 = vadd.f32 %v1499, %v1547
        %1553 = vst.msk [vmem:[%s544] sm:$0xff] %vm952, %v1549
        %1554 = vst.msk [vmem:[%s544 + $0x8] sm:$0xff] %vm952, %v1550
        %1555 = vst.msk [vmem:[%s544 + $0x10] sm:$0xff] %vm952, %v1551
        %1556 = vst.msk [vmem:[%s544 + $0x18] sm:$0xff] %vm952, %v1552
        %s1557 = sand.u32 %s311, 1
        %s1558 = scalar_lea.sflag [#allocation7], %s1557
        %s1559 = sand.u32 %s311, 1
        %s1560 = smul.addr %s1559, 32
        %s1561 = scalar_lea.vmem [#allocation17], %s1560
        // Predicated region
        $region101: #{tpu_custom_call.1} parent=67 // pred_check
          %p1562 = pneg %p321
        $region102: #{tpu_custom_call.1} parent=67 // pred_check_branch
          %1564 = sbr.rel (%p1562) target = $region104
        $region103: #{tpu_custom_call.1} parent=67 // pred_region
          %s1565 = smul.u32 4, %s37
          %1567 = vsyncadd %s1558, 0
          %s1568 = smul.addr %s36, 8
          %s1569 = sadd.s32 %s1565, %s1568
          %s1570 = smul.addr %s1569, 8
          %s1571 = scalar_lea.hbm %s12, %s1570
          %s1572 = sshll.u32 %s1561, 4
          %s1573 = int_to_ptr.vmem [resolvable:$true] %s1572
          %s1574 = sshll.u32 %s1571, 4
          %s1575 = int_to_ptr.hbm [resolvable:$true] %s1574
          %1580 = dma.vmem_to_hbm [thread:$0]  %s1573, 512, %s1575, %s1558, 128, 128, 8
        $region104: #{tpu_custom_call.1} parent=67 // pred_fallthru
          _
      $region68: #{tpu_custom_call.1} parent=5 // pred_fallthru
        _
      %p1581 = scmp.le.s32.totalorder 2, %s27
      // Predicated region
      $region105: #{tpu_custom_call.1} parent=5 // pred_check
        %p1582 = pneg %p1581
      $region106: #{tpu_custom_call.1} parent=5 // pred_check_branch
        %1584 = sbr.rel (%p1582) target = $region108
      $region107: #{tpu_custom_call.1} parent=5 // pred_region
        %s1585 = ssub.s32 %s27, 2
        // Predicated region
        $region109: #{tpu_custom_call.1} parent=107 // pred_check
          %p1586 = pneg %p327
        $region110: #{tpu_custom_call.1} parent=107 // pred_check_branch
          %1588 = sbr.rel (%p1586) target = $region112
        $region111: #{tpu_custom_call.1} parent=107 // pred_region
          %s1589 = sand.u32 %s312, 1
          %s1590 = scalar_lea.sflag [#allocation7], %s1589
          %s1591 = sand.u32 %s312, 1
          %s1592 = smul.addr %s1591, 32
          %s1593 = scalar_lea.vmem [#allocation17], %s1592
          %1595 = dma.done %s1590, 512
        $region112: #{tpu_custom_call.1} parent=107 // pred_fallthru
          _
      $region108: #{tpu_custom_call.1} parent=5 // pred_fallthru
        _
    $region6: #{tpu_custom_call.1} parent=1 // loop_footer
      %s31 = sadd.s32 1, %s27
    $region7: #{tpu_custom_call.1} parent=1 // loop_footer_branch
      %26 = sbr.rel target = $region3
    $region8: #{tpu_custom_call.1} parent=1 // loop_exit
      _
    %1596 = vsyncpa [#allocation6], 1
    %s1597 = scalar_lea.sflag [#allocation6], 1
    %1598 = vsyncpa %s1597, 1
    %1599 = vsyncpa [#allocation9], 1
    %1600 = vsyncpa [#allocation12], 1
    %1601 = vsyncpa [#allocation15], 1
    %1602 = vsyncpa [#allocation7], 1
    %s1603 = scalar_lea.sflag [#allocation7], 1
    %1604 = vsyncpa %s1603, 1

</llo_original>
